<compile_context>
chip_gen: v5e
topology: v5e:2x2
jax: 0.10.0
libtpu: 0.0.40
codegen_flags: <defaults>
</compile_context>

<pallas_src>
import functools

import jax
import jax.numpy as jnp
from jax.experimental import pallas as pl
from jax.experimental.pallas import tpu as pltpu

# ------------------------- model hyper-parameters -------------------------
WIN = 64                 # STFT window length
HOP = 32                 # STFT hop (WIN == 2*HOP -> gather-free framing)
F_BINS = WIN // 2 + 1    # 33 one-sided frequency bins
F2 = 2 * F_BINS          # 66 interleaved real/imag columns
ENH_HIDDEN = 64          # enhancement MLP hidden width (per channel)
ASR_HIDDEN = 32          # ASR embedding width
N_ENH_STAGES = 2         # length of esti_list
LANE = 128               # lane-dense column width
H_EXP = 2 * ENH_HIDDEN   # 128: channel-expanded hidden == one lane group


def _round_up(x, m):
    return ((x + m - 1) // m) * m


_STEP_OVERHEAD_ROWS = 64   # ~0.35us per grid step expressed as row-equivalents


def _pick_tile_f(tf):
    """Frames per block: padding- and per-step-overhead-aware, mult of 16, <=512."""
    tf16 = _round_up(tf, 16)
    if tf16 <= 512:
        return tf16                        # one block per batch, minimal padding
    best, best_cost = 512, None
    for cand in range(128, 513, 16):
        steps = -(-tf // cand)
        cost = (steps * cand - tf) + steps * _STEP_OVERHEAD_ROWS
        if best_cost is None or cost < best_cost:
            best, best_cost = cand, cost
    return best


def _choose_tiling(batch, tf):
    tile = _pick_tile_f(tf)
    tf_pad = _round_up(tf, tile)
    # v7x: keep >=2 total grid steps so both TensorCores get work (neutral on v5e/v6e).
    if batch * (tf_pad // tile) < 2 and tf > 16:
        tf_pad = _round_up(tf, 32)
        tile = tf_pad // 2
    return tile, tf_pad


# =============================== fused Pallas kernel ===============================
def _pipeline_kernel(lens_ref, frames_ref, basis_ref,
                     w1_ref, b1_ref, w2_ref, b2_ref, aw_ref, ab_ref,
                     clean_ref, emb_ref, *esti_refs):
    """One (1, tile_f, 128) frame-block of a single batch element through the pipeline."""
    b = pl.program_id(0)
    t = pl.program_id(1)
    tile_f = frames_ref.shape[1]

    frames = frames_ref[0]                       # (tile_f, 128) bf16: noisy|clean packed

    # STFT: one matmul against the block-diagonal windowed-DFT basis.
    # lanes 0:128 -> noisy spectrum, lanes 128:256 -> clean spectrum (interleaved re/im).
    stft_both = jnp.dot(frames, basis_ref[...], preferred_element_type=jnp.float32)
    cur = stft_both[:, :LANE]                    # noisy spectrum, enhancement input
    clean_stft = stft_both[:, LANE:]             # clean spectrum
    clean_ref[0] = clean_stft.astype(jnp.bfloat16)

    # Fused enhancement stages; the activation never leaves VMEM between stages.
    # Weights are "channel-expanded" so the per-channel shared-weight frequency MLP
    # acts directly on the interleaved (2f+c) spectrum columns.
    for s, e_ref in enumerate(esti_refs):
        h = jnp.dot(cur.astype(jnp.bfloat16), w1_ref[s],
                    preferred_element_type=jnp.float32) + b1_ref[s]
        h = jnp.maximum(h, 0.0)                  # elementwise kept in f32 (v5e-safe)
        cur = jnp.dot(h.astype(jnp.bfloat16), w2_ref[s],
                      preferred_element_type=jnp.float32) + b2_ref[s]
        e_ref[0] = cur.astype(jnp.bfloat16)

    # Per-row validity mask rebuilt in-kernel from the scalar-prefetched lengths
    # (no 1-lane f32 mask DMA / VMEM buffer).
    frame_idx = t * tile_f + jax.lax.broadcasted_iota(jnp.int32, (tile_f, LANE), 0)
    valid = frame_idx < lens_ref[b]

    # ASR encoder on [enhanced | clean] in ONE (tile,256)@(256,128) matmul; noisy
    # embedding lands in lanes 0:32, target embedding in lanes 32:64 of one slab.
    x = jnp.concatenate([cur, clean_stft], axis=-1).astype(jnp.bfloat16)   # (tile_f, 256)
    emb = jnp.tanh(jnp.dot(x, aw_ref[...], preferred_element_type=jnp.float32)
                   + ab_ref[...])
    emb_ref[0] = jnp.where(valid, emb, 0.0).astype(jnp.bfloat16)


def run_fused_pipeline(lens, frames, params, tile_f):
    basis, w1e, b1e, w2e, b2e, asr_w, asr_b = params
    batch, tf_pad, _ = frames.shape
    n_stages = w1e.shape[0]
    grid = (batch, tf_pad // tile_f)

    def full_spec(arr):
        nd = arr.ndim
        return pl.BlockSpec(arr.shape, lambda b, t, lens_ref, _nd=nd: (0,) * _nd)

    row_blk = pl.BlockSpec((1, tile_f, LANE), lambda b, t, lens_ref: (b, t, 0))

    # outputs: clean spectrum, merged embeddings, esti stages  -- all bf16 slabs.
    out_shape = tuple(jax.ShapeDtypeStruct((batch, tf_pad, LANE), jnp.bfloat16)
                      for _ in range(2 + n_stages))

    return pl.pallas_call(
        _pipeline_kernel,
        grid_spec=pltpu.PrefetchScalarGridSpec(
            num_scalar_prefetch=1,
            grid=grid,
            in_specs=[
                row_blk,                       # packed noisy|clean frames (bf16)
                full_spec(basis),
                full_spec(w1e), full_spec(b1e), full_spec(w2e), full_spec(b2e),
                full_spec(asr_w), full_spec(asr_b),
            ],
            out_specs=tuple([row_blk] * (2 + n_stages)),
        ),
        out_shape=out_shape,
        compiler_params=pltpu.CompilerParams(
            dimension_semantics=("parallel", "parallel"),   # shards across v7x TCs
            # <2 MiB/step even at tile_f=512 with 4 bf16 output streams double-
            # buffered; plenty of headroom vs v7x's 64 MiB physical VMEM.  Do not
            # grow tile_f past ~512 without rechecking.
            vmem_limit_bytes=32 * 1024 * 1024,
        ),
    )(lens, frames, basis, w1e, b1e, w2e, b2e, asr_w, asr_b)


# ================================ glue pieces ================================
def audio_normalizer(x):
    """AudioNormalizer(16000): channel-dim mono mix; 16k->16k resample is identity."""
    # TODO(synk): speechbrain AudioNormalizer resampling path is identity at equal rates.
    return jnp.mean(x[:, None, :], axis=1)


def frame_audio(x):
    """(B, T) -> (B, Tf, WIN) frames with reshape+concat (no gather; WIN == 2*HOP)."""
    b, t = x.shape
    assert WIN == 2 * HOP and t % HOP == 0
    blocks = x.reshape(b, t // HOP, HOP)
    return jnp.concatenate([blocks[:, :-1, :], blocks[:, 1:, :]], axis=-1)


# ================================ full pipeline ================================
def enhancement_pipeline(noisy_input, clean_target, length_ratio, params):
    clean = audio_normalizer(clean_target)
    noisy = audio_normalizer(noisy_input)

    noisy_frames = frame_audio(noisy)            # (B, Tf, WIN)
    clean_frames = frame_audio(clean)
    b, tf, _ = noisy_frames.shape

    # lane-dense packed input: noisy frame in lanes 0:64, clean frame in 64:128
    frames = jnp.concatenate([noisy_frames, clean_frames], axis=-1).astype(jnp.bfloat16)

    # per-batch valid frame count from length_ratio (mask rebuilt in-kernel)
    lens = jnp.round(length_ratio.astype(jnp.float32) * tf).astype(jnp.int32)   # (B,)

    tile_f, tf_pad = _choose_tiling(b, tf)
    if tf_pad > tf:
        frames = jnp.pad(frames, ((0, 0), (0, tf_pad - tf), (0, 0)))

    outs = run_fused_pipeline(lens, frames, params, tile_f)
    clean_slab, emb_slab, *esti_slabs = outs      # each (B, tf_pad, 128) bf16

    clean_stft = clean_slab[:, :tf, :F2].astype(jnp.float32).reshape(b, tf, F_BINS, 2)
    noisy_embed = emb_slab[:, :tf, 0:ASR_HIDDEN].astype(jnp.float32)
    target_embed = emb_slab[:, :tf, ASR_HIDDEN:2 * ASR_HIDDEN].astype(jnp.float32)

    # esti_list entries are returned in (B, 2, F, Tf); relayout happens on bf16 slabs
    # (half the traffic of the f32 version) and only for the returned intermediates.
    esti_list = [
        e[:, :tf, :F2].astype(jnp.float32).reshape(b, tf, F_BINS, 2).transpose(0, 3, 2, 1)
        for e in esti_slabs
    ]
    clean_stft_perm = jnp.transpose(clean_stft, (0, 3, 2, 1))                # (B,2,F,Tf)
    return noisy_embed, target_embed, clean_stft_perm, esti_list


# ================================ parameters ================================
def init_params(key):
    # Hann window (periodic) folded into a one-sided DFT basis whose columns are
    # interleaved [cos(f), -sin(f)] pairs, zero-padded to 128 lanes, then laid out
    # block-diagonally so ONE (.,128)@(128,256) matmul produces both branches.
    n = jnp.arange(WIN, dtype=jnp.float32)
    window = 0.5 - 0.5 * jnp.cos(2.0 * jnp.pi * n / WIN)
    ang = (2.0 * jnp.pi * n[:, None]
           * jnp.arange(F_BINS, dtype=jnp.float32)[None, :] / WIN)
    dft = jnp.stack([jnp.cos(ang), -jnp.sin(ang)], axis=-1).reshape(WIN, F2)
    win_dft = jnp.pad(window[:, None] * dft, ((0, 0), (0, LANE - F2)))       # (64, 128)
    basis = jnp.zeros((2 * WIN, 2 * LANE), jnp.float32)
    basis = basis.at[0:WIN, 0:LANE].set(win_dft)                 # noisy -> lanes 0:128
    basis = basis.at[WIN:2 * WIN, LANE:2 * LANE].set(win_dft)    # clean -> lanes 128:256
    basis = basis.astype(jnp.bfloat16)                                       # (128, 256)

    keys = jax.random.split(key, 2 * N_ENH_STAGES + 2)
    w1e, b1e, w2e, b2e = [], [], [], []
    for s in range(N_ENH_STAGES):
        w1 = 0.1 * jax.random.normal(keys[2 * s + 0], (F_BINS, ENH_HIDDEN), jnp.float32)
        b1 = jnp.zeros((ENH_HIDDEN,), jnp.float32)
        w2 = 0.1 * jax.random.normal(keys[2 * s + 1], (ENH_HIDDEN, F_BINS), jnp.float32)
        b2 = jnp.zeros((F_BINS,), jnp.float32)

        # Channel-expanded weights: the same per-channel frequency MLP acts directly
        # on the interleaved (2f + c) spectrum columns (c=0 real, c=1 imag).
        w1x = jnp.zeros((LANE, H_EXP), jnp.float32)
        w1x = w1x.at[0:F2:2, 0:ENH_HIDDEN].set(w1)
        w1x = w1x.at[1:F2:2, ENH_HIDDEN:2 * ENH_HIDDEN].set(w1)
        b1x = jnp.zeros((H_EXP,), jnp.float32)
        b1x = b1x.at[0:ENH_HIDDEN].set(b1).at[ENH_HIDDEN:2 * ENH_HIDDEN].set(b1)
        w2x = jnp.zeros((H_EXP, LANE), jnp.float32)
        w2x = w2x.at[0:ENH_HIDDEN, 0:F2:2].set(w2)
        w2x = w2x.at[ENH_HIDDEN:2 * ENH_HIDDEN, 1:F2:2].set(w2)
        b2x = jnp.zeros((LANE,), jnp.float32)
        b2x = b2x.at[0:F2:2].set(b2).at[1:F2:2].set(b2)

        w1e.append(w1x); b1e.append(b1x); w2e.append(w2x); b2e.append(b2x)

    w1e = jnp.stack(w1e).astype(jnp.bfloat16)        # (S, 128, 128)
    b1e = jnp.stack(b1e)[:, None, :]                 # (S, 1, 128) f32
    w2e = jnp.stack(w2e).astype(jnp.bfloat16)        # (S, 128, 128)
    b2e = jnp.stack(b2e)[:, None, :]                 # (S, 1, 128) f32

    # Shared ASR weights combined for the single [enhanced | clean] matmul:
    #  rows 0:128 map the enhanced spectrum -> lanes 0:32 (noisy embed),
    #  rows 128:256 map the clean spectrum  -> lanes 32:64 (target embed).
    asr_w = 0.1 * jax.random.normal(keys[-2], (F2, ASR_HIDDEN), jnp.float32)
    asr_b = 0.01 * jax.random.normal(keys[-1], (1, ASR_HIDDEN), jnp.float32)
    asr_w_comb = jnp.zeros((2 * LANE, LANE), jnp.float32)
    asr_w_comb = asr_w_comb.at[0:F2, 0:ASR_HIDDEN].set(asr_w)
    asr_w_comb = asr_w_comb.at[LANE:LANE + F2, ASR_HIDDEN:2 * ASR_HIDDEN].set(asr_w)
    asr_w_comb = asr_w_comb.astype(jnp.bfloat16)                             # (256, 128)
    asr_b_comb = jnp.zeros((1, LANE), jnp.float32)
    asr_b_comb = asr_b_comb.at[:, 0:ASR_HIDDEN].set(asr_b)
    asr_b_comb = asr_b_comb.at[:, ASR_HIDDEN:2 * ASR_HIDDEN].set(asr_b)

    return basis, w1e, b1e, w2e, b2e, asr_w_comb, asr_b_comb


if __name__ == "__main__":
    B = 2
    TF = 16
    T_SAMPLES = WIN + (TF - 1) * HOP     # 544 samples -> 16 frames

    key = jax.random.PRNGKey(0)
    k_n, k_c, k_p = jax.random.split(key, 3)
    noisy_input = jax.random.normal(k_n, (B, T_SAMPLES), jnp.float32)
    clean_target = jax.random.normal(k_c, (B, T_SAMPLES), jnp.float32)
    length_ratio = jnp.array([1.0, 0.75], jnp.float32)

    params = init_params(k_p)

    fwd = jax.jit(functools.partial(enhancement_pipeline, params=params))
    noisy_embed, target_embed, clean_stft_perm, esti_list = fwd(
        noisy_input, clean_target, length_ratio
    )
    jax.block_until_ready((noisy_embed, target_embed, clean_stft_perm, esti_list))

    assert noisy_embed.shape == (B, TF, ASR_HIDDEN)
    assert target_embed.shape == (B, TF, ASR_HIDDEN)
    assert clean_stft_perm.shape == (B, 2, F_BINS, TF)
    assert len(esti_list) == N_ENH_STAGES and esti_list[-1].shape == (B, 2, F_BINS, TF)
    print("KERNEL_OK")
</pallas_src>

<mosaic_0001>
module attributes {stable_mosaic.version = 11 : i64} {
  func.func @_pipeline_kernel(%arg0: i32, %arg1: i32, %arg2: memref<2xi32, #tpu.memory_space<smem>>, %arg3: memref<1x16x128xbf16, #tpu.memory_space<vmem>>, %arg4: memref<128x256xbf16, #tpu.memory_space<vmem>>, %arg5: memref<2x128x128xbf16, #tpu.memory_space<vmem>>, %arg6: memref<2x1x128xf32, #tpu.memory_space<vmem>>, %arg7: memref<2x128x128xbf16, #tpu.memory_space<vmem>>, %arg8: memref<2x1x128xf32, #tpu.memory_space<vmem>>, %arg9: memref<256x128xbf16, #tpu.memory_space<vmem>>, %arg10: memref<1x128xf32, #tpu.memory_space<vmem>>, %arg11: memref<1x16x128xbf16, #tpu.memory_space<vmem>>, %arg12: memref<1x16x128xbf16, #tpu.memory_space<vmem>>, %arg13: memref<1x16x128xbf16, #tpu.memory_space<vmem>>, %arg14: memref<1x16x128xbf16, #tpu.memory_space<vmem>>) attributes {dimension_semantics = [#tpu.dimension_semantics<parallel>, #tpu.dimension_semantics<parallel>], iteration_bounds = array<i64: 2, 1>, scalar_prefetch = 1 : i64, scratch_operands = 0 : i64, tpu.core_type = #tpu.core_type<tc>, window_params = [{transform_indices = @transform_0, window_bounds = array<i64: 1, 16, 128>}, {pipeline_mode = #tpu.pipeline_mode<synchronous>, transform_indices = @transform_1, window_bounds = array<i64: 128, 256>}, {pipeline_mode = #tpu.pipeline_mode<synchronous>, transform_indices = @transform_2, window_bounds = array<i64: 2, 128, 128>}, {pipeline_mode = #tpu.pipeline_mode<synchronous>, transform_indices = @transform_3, window_bounds = array<i64: 2, 1, 128>}, {pipeline_mode = #tpu.pipeline_mode<synchronous>, transform_indices = @transform_4, window_bounds = array<i64: 2, 128, 128>}, {pipeline_mode = #tpu.pipeline_mode<synchronous>, transform_indices = @transform_5, window_bounds = array<i64: 2, 1, 128>}, {pipeline_mode = #tpu.pipeline_mode<synchronous>, transform_indices = @transform_6, window_bounds = array<i64: 256, 128>}, {pipeline_mode = #tpu.pipeline_mode<synchronous>, transform_indices = @transform_7, window_bounds = array<i64: 1, 128>}, {transform_indices = @transform_8, window_bounds = array<i64: 1, 16, 128>}, {transform_indices = @transform_9, window_bounds = array<i64: 1, 16, 128>}, {transform_indices = @transform_10, window_bounds = array<i64: 1, 16, 128>}, {transform_indices = @transform_11, window_bounds = array<i64: 1, 16, 128>}]} {
    %c0 = arith.constant 0 : index
    %c0_0 = arith.constant 0 : index
    %c0_1 = arith.constant 0 : index
    %0 = vector.load %arg3[%c0, %c0_0, %c0_1] : memref<1x16x128xbf16, #tpu.memory_space<vmem>>, vector<1x16x128xbf16>
    %1 = vector.shape_cast %0 : vector<1x16x128xbf16> to vector<16x128xbf16>
    %c0_2 = arith.constant 0 : index
    %c0_3 = arith.constant 0 : index
    %2 = vector.load %arg4[%c0_2, %c0_3] : memref<128x256xbf16, #tpu.memory_space<vmem>>, vector<128x256xbf16>
    %cst = arith.constant dense<0.000000e+00> : vector<16x256xf32>
    %3 = tpu.matmul %1, %2, %cst {dimension_numbers = #tpu.dot_dimension_numbers<[1], [0], [0], [1], [0, 0, 1, 1], [], []>} : vector<16x128xbf16>, vector<128x256xbf16>, vector<16x256xf32> -> vector<16x256xf32>
    %4 = vector.extract_strided_slice %3 {offsets = [0, 0], sizes = [16, 128], strides = [1, 1]} : vector<16x256xf32> to vector<16x128xf32>
    %5 = vector.extract_strided_slice %3 {offsets = [0, 128], sizes = [16, 128], strides = [1, 1]} : vector<16x256xf32> to vector<16x128xf32>
    %6 = arith.truncf %5 : vector<16x128xf32> to vector<16x128xbf16>
    %c0_4 = arith.constant 0 : index
    %c0_5 = arith.constant 0 : index
    %c0_6 = arith.constant 0 : index
    %7 = vector.load %arg11[%c0_4, %c0_5, %c0_6] : memref<1x16x128xbf16, #tpu.memory_space<vmem>>, vector<1x16x128xbf16>
    %8 = vector.shape_cast %7 : vector<1x16x128xbf16> to vector<16x128xbf16>
    %9 = vector.shape_cast %6 : vector<16x128xbf16> to vector<1x16x128xbf16>
    tpu.vector_store %arg11[%c0_4, %c0_5, %c0_6], %9 {strides = array<i32>} : memref<1x16x128xbf16, #tpu.memory_space<vmem>>, vector<1x16x128xbf16>,
    %10 = arith.truncf %4 : vector<16x128xf32> to vector<16x128xbf16>
    %c0_7 = arith.constant 0 : index
    %c0_8 = arith.constant 0 : index
    %c0_9 = arith.constant 0 : index
    %11 = vector.load %arg5[%c0_7, %c0_8, %c0_9] : memref<2x128x128xbf16, #tpu.memory_space<vmem>>, vector<1x128x128xbf16>
    %12 = vector.shape_cast %11 : vector<1x128x128xbf16> to vector<128x128xbf16>
    %cst_10 = arith.constant dense<0.000000e+00> : vector<16x128xf32>
    %13 = tpu.matmul %10, %12, %cst_10 {dimension_numbers = #tpu.dot_dimension_numbers<[1], [0], [0], [1], [0, 0, 1, 1], [], []>} : vector<16x128xbf16>, vector<128x128xbf16>, vector<16x128xf32> -> vector<16x128xf32>
    %c0_11 = arith.constant 0 : index
    %c0_12 = arith.constant 0 : index
    %c0_13 = arith.constant 0 : index
    %14 = vector.load %arg6[%c0_11, %c0_12, %c0_13] : memref<2x1x128xf32, #tpu.memory_space<vmem>>, vector<1x1x128xf32>
    %15 = vector.shape_cast %14 : vector<1x1x128xf32> to vector<1x128xf32>
    %16 = vector.broadcast %15 : vector<1x128xf32> to vector<16x128xf32>
    %17 = arith.addf %13, %16 : vector<16x128xf32>
    %cst_14 = arith.constant 0.000000e+00 : f32
    %18 = vector.broadcast %cst_14 : f32 to vector<16x128xf32>
    %19 = arith.maximumf %17, %18 : vector<16x128xf32>
    %20 = arith.truncf %19 : vector<16x128xf32> to vector<16x128xbf16>
    %c0_15 = arith.constant 0 : index
    %c0_16 = arith.constant 0 : index
    %c0_17 = arith.constant 0 : index
    %21 = vector.load %arg7[%c0_15, %c0_16, %c0_17] : memref<2x128x128xbf16, #tpu.memory_space<vmem>>, vector<1x128x128xbf16>
    %22 = vector.shape_cast %21 : vector<1x128x128xbf16> to vector<128x128xbf16>
    %cst_18 = arith.constant dense<0.000000e+00> : vector<16x128xf32>
    %23 = tpu.matmul %20, %22, %cst_18 {dimension_numbers = #tpu.dot_dimension_numbers<[1], [0], [0], [1], [0, 0, 1, 1], [], []>} : vector<16x128xbf16>, vector<128x128xbf16>, vector<16x128xf32> -> vector<16x128xf32>
    %c0_19 = arith.constant 0 : index
    %c0_20 = arith.constant 0 : index
    %c0_21 = arith.constant 0 : index
    %24 = vector.load %arg8[%c0_19, %c0_20, %c0_21] : memref<2x1x128xf32, #tpu.memory_space<vmem>>, vector<1x1x128xf32>
    %25 = vector.shape_cast %24 : vector<1x1x128xf32> to vector<1x128xf32>
    %26 = vector.broadcast %25 : vector<1x128xf32> to vector<16x128xf32>
    %27 = arith.addf %23, %26 : vector<16x128xf32>
    %28 = arith.truncf %27 : vector<16x128xf32> to vector<16x128xbf16>
    %c0_22 = arith.constant 0 : index
    %c0_23 = arith.constant 0 : index
    %c0_24 = arith.constant 0 : index
    %29 = vector.load %arg13[%c0_22, %c0_23, %c0_24] : memref<1x16x128xbf16, #tpu.memory_space<vmem>>, vector<1x16x128xbf16>
    %30 = vector.shape_cast %29 : vector<1x16x128xbf16> to vector<16x128xbf16>
    %31 = vector.shape_cast %28 : vector<16x128xbf16> to vector<1x16x128xbf16>
    tpu.vector_store %arg13[%c0_22, %c0_23, %c0_24], %31 {strides = array<i32>} : memref<1x16x128xbf16, #tpu.memory_space<vmem>>, vector<1x16x128xbf16>,
    %32 = arith.truncf %27 : vector<16x128xf32> to vector<16x128xbf16>
    %c1 = arith.constant 1 : index
    %c0_25 = arith.constant 0 : index
    %c0_26 = arith.constant 0 : index
    %33 = vector.load %arg5[%c1, %c0_25, %c0_26] : memref<2x128x128xbf16, #tpu.memory_space<vmem>>, vector<1x128x128xbf16>
    %34 = vector.shape_cast %33 : vector<1x128x128xbf16> to vector<128x128xbf16>
    %cst_27 = arith.constant dense<0.000000e+00> : vector<16x128xf32>
    %35 = tpu.matmul %32, %34, %cst_27 {dimension_numbers = #tpu.dot_dimension_numbers<[1], [0], [0], [1], [0, 0, 1, 1], [], []>} : vector<16x128xbf16>, vector<128x128xbf16>, vector<16x128xf32> -> vector<16x128xf32>
    %c1_28 = arith.constant 1 : index
    %c0_29 = arith.constant 0 : index
    %c0_30 = arith.constant 0 : index
    %36 = vector.load %arg6[%c1_28, %c0_29, %c0_30] : memref<2x1x128xf32, #tpu.memory_space<vmem>>, vector<1x1x128xf32>
    %37 = vector.shape_cast %36 : vector<1x1x128xf32> to vector<1x128xf32>
    %38 = vector.broadcast %37 : vector<1x128xf32> to vector<16x128xf32>
    %39 = arith.addf %35, %38 : vector<16x128xf32>
    %cst_31 = arith.constant 0.000000e+00 : f32
    %40 = vector.broadcast %cst_31 : f32 to vector<16x128xf32>
    %41 = arith.maximumf %39, %40 : vector<16x128xf32>
    %42 = arith.truncf %41 : vector<16x128xf32> to vector<16x128xbf16>
    %c1_32 = arith.constant 1 : index
    %c0_33 = arith.constant 0 : index
    %c0_34 = arith.constant 0 : index
    %43 = vector.load %arg7[%c1_32, %c0_33, %c0_34] : memref<2x128x128xbf16, #tpu.memory_space<vmem>>, vector<1x128x128xbf16>
    %44 = vector.shape_cast %43 : vector<1x128x128xbf16> to vector<128x128xbf16>
    %cst_35 = arith.constant dense<0.000000e+00> : vector<16x128xf32>
    %45 = tpu.matmul %42, %44, %cst_35 {dimension_numbers = #tpu.dot_dimension_numbers<[1], [0], [0], [1], [0, 0, 1, 1], [], []>} : vector<16x128xbf16>, vector<128x128xbf16>, vector<16x128xf32> -> vector<16x128xf32>
    %c1_36 = arith.constant 1 : index
    %c0_37 = arith.constant 0 : index
    %c0_38 = arith.constant 0 : index
    %46 = vector.load %arg8[%c1_36, %c0_37, %c0_38] : memref<2x1x128xf32, #tpu.memory_space<vmem>>, vector<1x1x128xf32>
    %47 = vector.shape_cast %46 : vector<1x1x128xf32> to vector<1x128xf32>
    %48 = vector.broadcast %47 : vector<1x128xf32> to vector<16x128xf32>
    %49 = arith.addf %45, %48 : vector<16x128xf32>
    %50 = arith.truncf %49 : vector<16x128xf32> to vector<16x128xbf16>
    %c0_39 = arith.constant 0 : index
    %c0_40 = arith.constant 0 : index
    %c0_41 = arith.constant 0 : index
    %51 = vector.load %arg14[%c0_39, %c0_40, %c0_41] : memref<1x16x128xbf16, #tpu.memory_space<vmem>>, vector<1x16x128xbf16>
    %52 = vector.shape_cast %51 : vector<1x16x128xbf16> to vector<16x128xbf16>
    %53 = vector.shape_cast %50 : vector<16x128xbf16> to vector<1x16x128xbf16>
    tpu.vector_store %arg14[%c0_39, %c0_40, %c0_41], %53 {strides = array<i32>} : memref<1x16x128xbf16, #tpu.memory_space<vmem>>, vector<1x16x128xbf16>,
    %c16_i32 = arith.constant 16 : i32
    %54 = arith.muli %arg1, %c16_i32 : i32
    %55 = tpu.iota {dimensions = array<i32: 0>} : vector<16x128xi32>
    %56 = vector.broadcast %54 : i32 to vector<16x128xi32>
    %57 = arith.addi %56, %55 : vector<16x128xi32>
    %58 = arith.index_cast %arg0 : i32 to index
    %59 = memref.load %arg2[%58] : memref<2xi32, #tpu.memory_space<smem>>
    %60 = vector.broadcast %59 : i32 to vector<16x128xi32>
    %61 = arith.cmpi slt, %57, %60 : vector<16x128xi32>
    %62 = tpu.concatenate %49, %5 in 1 : vector<16x128xf32>, vector<16x128xf32> -> vector<16x256xf32>
    %63 = arith.truncf %62 : vector<16x256xf32> to vector<16x256xbf16>
    %c0_42 = arith.constant 0 : index
    %c0_43 = arith.constant 0 : index
    %64 = vector.load %arg9[%c0_42, %c0_43] : memref<256x128xbf16, #tpu.memory_space<vmem>>, vector<256x128xbf16>
    %cst_44 = arith.constant dense<0.000000e+00> : vector<16x128xf32>
    %65 = tpu.matmul %63, %64, %cst_44 {dimension_numbers = #tpu.dot_dimension_numbers<[1], [0], [0], [1], [0, 0, 1, 1], [], []>} : vector<16x256xbf16>, vector<256x128xbf16>, vector<16x128xf32> -> vector<16x128xf32>
    %c0_45 = arith.constant 0 : index
    %c0_46 = arith.constant 0 : index
    %66 = vector.load %arg10[%c0_45, %c0_46] : memref<1x128xf32, #tpu.memory_space<vmem>>, vector<1x128xf32>
    %67 = vector.broadcast %66 : vector<1x128xf32> to vector<16x128xf32>
    %68 = arith.addf %65, %67 : vector<16x128xf32>
    %69 = math.tanh %68 : vector<16x128xf32>
    %cst_47 = arith.constant 0.000000e+00 : f32
    %70 = vector.broadcast %cst_47 : f32 to vector<16x128xf32>
    %71 = arith.select %61, %69, %70 : vector<16x128xi1>, vector<16x128xf32>
    %72 = arith.truncf %71 : vector<16x128xf32> to vector<16x128xbf16>
    %c0_48 = arith.constant 0 : index
    %c0_49 = arith.constant 0 : index
    %c0_50 = arith.constant 0 : index
    %73 = vector.load %arg12[%c0_48, %c0_49, %c0_50] : memref<1x16x128xbf16, #tpu.memory_space<vmem>>, vector<1x16x128xbf16>
    %74 = vector.shape_cast %73 : vector<1x16x128xbf16> to vector<16x128xbf16>
    %75 = vector.shape_cast %72 : vector<16x128xbf16> to vector<1x16x128xbf16>
    tpu.vector_store %arg12[%c0_48, %c0_49, %c0_50], %75 {strides = array<i32>} : memref<1x16x128xbf16, #tpu.memory_space<vmem>>, vector<1x16x128xbf16>,
    return
  }
  func.func @transform_0(%arg0: i32, %arg1: i32, %arg2: memref<2xi32, #tpu.memory_space<smem>>) -> (i32, i32, i32) {
    %c0_i32 = arith.constant 0 : i32
    %c0_i32_0 = arith.constant 0 : i32
    return %arg0, %arg1, %c0_i32 : i32, i32, i32
  }
  func.func @transform_1(%arg0: i32, %arg1: i32, %arg2: memref<2xi32, #tpu.memory_space<smem>>) -> (i32, i32) {
    %c0_i32 = arith.constant 0 : i32
    %c0_i32_0 = arith.constant 0 : i32
    %c0_i32_1 = arith.constant 0 : i32
    return %c0_i32, %c0_i32_0 : i32, i32
  }
  func.func @transform_2(%arg0: i32, %arg1: i32, %arg2: memref<2xi32, #tpu.memory_space<smem>>) -> (i32, i32, i32) {
    %c0_i32 = arith.constant 0 : i32
    %c0_i32_0 = arith.constant 0 : i32
    %c0_i32_1 = arith.constant 0 : i32
    %c0_i32_2 = arith.constant 0 : i32
    return %c0_i32, %c0_i32_0, %c0_i32_1 : i32, i32, i32
  }
  func.func @transform_3(%arg0: i32, %arg1: i32, %arg2: memref<2xi32, #tpu.memory_space<smem>>) -> (i32, i32, i32) {
    %c0_i32 = arith.constant 0 : i32
    %c0_i32_0 = arith.constant 0 : i32
    %c0_i32_1 = arith.constant 0 : i32
    %c0_i32_2 = arith.constant 0 : i32
    return %c0_i32, %c0_i32_0, %c0_i32_1 : i32, i32, i32
  }
  func.func @transform_4(%arg0: i32, %arg1: i32, %arg2: memref<2xi32, #tpu.memory_space<smem>>) -> (i32, i32, i32) {
    %c0_i32 = arith.constant 0 : i32
    %c0_i32_0 = arith.constant 0 : i32
    %c0_i32_1 = arith.constant 0 : i32
    %c0_i32_2 = arith.constant 0 : i32
    return %c0_i32, %c0_i32_0, %c0_i32_1 : i32, i32, i32
  }
  func.func @transform_5(%arg0: i32, %arg1: i32, %arg2: memref<2xi32, #tpu.memory_space<smem>>) -> (i32, i32, i32) {
    %c0_i32 = arith.constant 0 : i32
    %c0_i32_0 = arith.constant 0 : i32
    %c0_i32_1 = arith.constant 0 : i32
    %c0_i32_2 = arith.constant 0 : i32
    return %c0_i32, %c0_i32_0, %c0_i32_1 : i32, i32, i32
  }
  func.func @transform_6(%arg0: i32, %arg1: i32, %arg2: memref<2xi32, #tpu.memory_space<smem>>) -> (i32, i32) {
    %c0_i32 = arith.constant 0 : i32
    %c0_i32_0 = arith.constant 0 : i32
    %c0_i32_1 = arith.constant 0 : i32
    return %c0_i32, %c0_i32_0 : i32, i32
  }
  func.func @transform_7(%arg0: i32, %arg1: i32, %arg2: memref<2xi32, #tpu.memory_space<smem>>) -> (i32, i32) {
    %c0_i32 = arith.constant 0 : i32
    %c0_i32_0 = arith.constant 0 : i32
    %c0_i32_1 = arith.constant 0 : i32
    return %c0_i32, %c0_i32_0 : i32, i32
  }
  func.func @transform_8(%arg0: i32, %arg1: i32, %arg2: memref<2xi32, #tpu.memory_space<smem>>) -> (i32, i32, i32) {
    %c0_i32 = arith.constant 0 : i32
    %c0_i32_0 = arith.constant 0 : i32
    return %arg0, %arg1, %c0_i32 : i32, i32, i32
  }
  func.func @transform_9(%arg0: i32, %arg1: i32, %arg2: memref<2xi32, #tpu.memory_space<smem>>) -> (i32, i32, i32) {
    %c0_i32 = arith.constant 0 : i32
    %c0_i32_0 = arith.constant 0 : i32
    return %arg0, %arg1, %c0_i32 : i32, i32, i32
  }
  func.func @transform_10(%arg0: i32, %arg1: i32, %arg2: memref<2xi32, #tpu.memory_space<smem>>) -> (i32, i32, i32) {
    %c0_i32 = arith.constant 0 : i32
    %c0_i32_0 = arith.constant 0 : i32
    return %arg0, %arg1, %c0_i32 : i32, i32, i32
  }
  func.func @transform_11(%arg0: i32, %arg1: i32, %arg2: memref<2xi32, #tpu.memory_space<smem>>) -> (i32, i32, i32) {
    %c0_i32 = arith.constant 0 : i32
    %c0_i32_0 = arith.constant 0 : i32
    return %arg0, %arg1, %c0_i32 : i32, i32, i32
  }
}

</mosaic_0001>

<llo_original>
// kernel: enhancement_pipeline.1
$region0: #{enhancement_pipeline.1}
  #allocation0 [shape = 'u32[]', space=smem, size = 0x4, offset = 0x4, fixed_abs, tag = 'smem constant byte address 0x4 - core index']
  #allocation1 [shape = 'u32[72,128]{1,0:T(1,128)}', space=vmem, size = 0x9000, scoped, tag = 'internal scratch']
  #allocation2 [shape = 's32[1]{0}', space=sflag, size = 0x4, scoped, tag = 'scoped memory for enhancement_pipeline.1']
  #allocation3 [shape = 'u8[512]{0}', space=smem, size = 0x200, scoped, tag = 'prefetched SMEM operand 0']
  %s0 = inlined_call_operand.vmem [shape: s32[2], index: 0, kind: input, shape index: {}]
  %s1 = inlined_call_operand.vmem [shape: bf16[2,16,128], index: 1, kind: input, shape index: {}]
  %s2 = inlined_call_operand.hbm [shape: bf16[128,256], index: 2, kind: input, shape index: {}]
  %s3 = inlined_call_operand.hbm [shape: bf16[2,128,128], index: 3, kind: input, shape index: {}]
  %s4 = inlined_call_operand.vmem [shape: f32[2,1,128], index: 4, kind: input, shape index: {}, may-alias: {4,6}]
  %s5 = inlined_call_operand.vmem [shape: bf16[2,128,128], index: 5, kind: input, shape index: {}]
  %s6 = inlined_call_operand.vmem [shape: f32[2,1,128], index: 6, kind: input, shape index: {}, may-alias: {4,6}]
  %s7 = inlined_call_operand.vmem [shape: bf16[256,128], index: 7, kind: input, shape index: {}]
  %s8 = inlined_call_operand.vmem [shape: f32[1,128], index: 8, kind: input, shape index: {}]
  %s9 = inlined_call_operand.vmem [shape: bf16[2,16,128], index: 9, kind: output, shape index: {0}]
  %s10 = inlined_call_operand.vmem [shape: bf16[2,16,128], index: 10, kind: output, shape index: {1}]
  %s11 = inlined_call_operand.vmem [shape: bf16[2,16,128], index: 11, kind: output, shape index: {2}]
  %s12 = inlined_call_operand.vmem [shape: bf16[2,16,128], index: 12, kind: output, shape index: {3}]
  %13 = xla_tuple %s9, %s10, %s11, %s12
  %s14 = sld [smem:[#allocation0]]
  $region97: #{enhancement_pipeline.1} parent=0
    _
  %s16 = ssub.s32 1, %s14
  %s17 = scalar_select 0, %s16, %s14
  %s19 = sshll.u32 %s0, 4
  %s20 = int_to_ptr.vmem [resolvable:$true] %s19
  %22 = dma.vmem_to_smem %s20, 16, [#allocation3], [#allocation2]
  %24 = dma.done [#allocation2], 16
  %25 = sfence
  $region1: #{enhancement_pipeline.1} parent=0
    #allocation4 [shape = 'u8[65536]{0}', space=vmem, size = 0x10000, scoped, tag = 'input window, operand 2, single buffered']
    #allocation5 [shape = 's32[2]{0}', space=sflag, size = 0x8, scoped, tag = 'scoped memory for enhancement_pipeline.1']
    #allocation6 [shape = 'u8[65536]{0}', space=vmem, size = 0x10000, scoped, tag = 'input window, operand 3, single buffered']
    #allocation7 [shape = 's32[1]{0}', space=sflag, size = 0x4, scoped, tag = 'scoped memory for enhancement_pipeline.1']
    %26 = vsyncpa [#allocation5], 0
    %27 = vsyncpa [#allocation7], 0
    loop: start=0, step=1, limit=4
    $region2: #{enhancement_pipeline.1} parent=1 // loop_pre_header
      _
    $region3: #{enhancement_pipeline.1} parent=1 // loop_header
      %s29 = sphi 0, %s33
      %p30 = scmp.ge.s32.totalorder %s29, 4
      %s36 = sphi 0, %s48
      %s37 = sphi 0, %s44
      %s38 = sphi 0, %s36
      %s39 = sphi 0, %s37
      %s40 = sphi 0, %s38
      %s41 = sphi 0, %s39
      %s53 = sphi 0, %s55
      %s56 = sphi 0, %s53
      %s57 = sphi 0, %s56
      %s73 = sphi 0, %s57
      %s77 = sphi 0, %s77
      %s79 = sphi 0, %s77
      %s80 = sphi 0, %s79
      %s94 = sphi 0, %s80
      %s98 = sphi 0, %s98
      %s100 = sphi 0, %s98
      %s101 = sphi 0, %s100
      %s115 = sphi 0, %s101
      %s119 = sphi 0, %s119
      %s121 = sphi 0, %s119
      %s122 = sphi 0, %s121
      %s136 = sphi 0, %s122
      %s140 = sphi 0, %s140
      %s142 = sphi 0, %s140
      %s143 = sphi 0, %s142
      %s157 = sphi 0, %s143
      %s161 = sphi 0, %s161
      %s163 = sphi 0, %s161
      %s164 = sphi 0, %s163
      %s178 = sphi 0, %s164
      %s182 = sphi 0, %s182
      %s184 = sphi 0, %s182
      %s185 = sphi 0, %s184
      %s199 = sphi 0, %s185
      %s203 = sphi 0, %s203
      %s205 = sphi 0, %s203
      %s206 = sphi 0, %s205
      %s220 = sphi 0, %s206
      %s228 = sphi 0, %s230
      %s231 = sphi 0, %s228
      %s232 = sphi 0, %s231
      %s248 = sphi 0, %s232
      %s256 = sphi 0, %s258
      %s259 = sphi 0, %s256
      %s260 = sphi 0, %s259
      %s276 = sphi 0, %s260
      %s284 = sphi 0, %s286
      %s287 = sphi 0, %s284
      %s288 = sphi 0, %s287
      %s304 = sphi 0, %s288
      %s312 = sphi 0, %s314
      %s315 = sphi 0, %s312
      %s316 = sphi 0, %s315
      %s332 = sphi 0, %s316
    $region4: #{enhancement_pipeline.1} parent=1 // loop_header_branch
      %32 = sbr.rel (%p30) target = $region8
    $region5: #{enhancement_pipeline.1} parent=1 // loop_body
      %s34 = ssub.s32 %s29, 1
      %s35 = ssub.s32 %s29, 2
      %s42 = sadd.s32 1, %s37
      %p43 = scmp.ge.s32.totalorder %s42, 1
      %s44 = scalar_select %p43, 0, %s42
      %s45 = sadd.s32 1, %s36
      %s46 = scalar_select %p43, %s45, %s36
      %p47 = scmp.ge.s32.totalorder %s46, 2
      %s48 = scalar_select %p47, 0, %s46
      %s49 = ssub.s32 %s36, %s48
      %s50 = ssub.s32 %s37, %s44
      %s51 = sor.u32 %s49, %s50
      %p52 = scmp.eq.s32.totalorder %s51, 0
      %s54 = sadd.s32 %s53, 1
      %s55 = scalar_select %p52, %s53, %s54
      %p58 = pneg %p52
      %p59 = scmp.eq.s32.totalorder %s29, 1
      %p60 = por %p58, %p59
      %p61 = scmp.ne.s32.totalorder %s53, %s56
      %p62 = scmp.eq.s32.totalorder %s29, 0
      %p63 = por %p61, %p62
      %p64 = scmp.ne.s32.totalorder %s53, %s56
      %p65 = scmp.eq.s32.totalorder %s34, 1
      %p66 = por %p64, %p65
      %p67 = scmp.ne.s32.totalorder %s56, %s57
      %p68 = scmp.eq.s32.totalorder %s34, 0
      %p69 = por %p67, %p68
      %p70 = scmp.ne.s32.totalorder %s56, %s57
      %p71 = scmp.eq.s32.totalorder %s35, 1
      %p72 = por %p70, %p71
      %p74 = scmp.ne.s32.totalorder %s57, %s73
      %p75 = scmp.eq.s32.totalorder %s35, 0
      %p76 = por %p74, %p75
      %s78 = sadd.s32 %s77, 1
      %p81 = scmp.eq.s32.totalorder %s29, 1
      %p82 = scmp.ne.s32.totalorder %s77, %s79
      %p83 = scmp.eq.s32.totalorder %s29, 0
      %p84 = por %p82, %p83
      %p85 = scmp.ne.s32.totalorder %s77, %s79
      %p86 = scmp.eq.s32.totalorder %s34, 1
      %p87 = por %p85, %p86
      %p88 = scmp.ne.s32.totalorder %s79, %s80
      %p89 = scmp.eq.s32.totalorder %s34, 0
      %p90 = por %p88, %p89
      %p91 = scmp.ne.s32.totalorder %s79, %s80
      %p92 = scmp.eq.s32.totalorder %s35, 1
      %p93 = por %p91, %p92
      %p95 = scmp.ne.s32.totalorder %s80, %s94
      %p96 = scmp.eq.s32.totalorder %s35, 0
      %p97 = por %p95, %p96
      %s99 = sadd.s32 %s98, 1
      %p102 = scmp.eq.s32.totalorder %s29, 1
      %p103 = scmp.ne.s32.totalorder %s98, %s100
      %p104 = scmp.eq.s32.totalorder %s29, 0
      %p105 = por %p103, %p104
      %p106 = scmp.ne.s32.totalorder %s98, %s100
      %p107 = scmp.eq.s32.totalorder %s34, 1
      %p108 = por %p106, %p107
      %p109 = scmp.ne.s32.totalorder %s100, %s101
      %p110 = scmp.eq.s32.totalorder %s34, 0
      %p111 = por %p109, %p110
      %p112 = scmp.ne.s32.totalorder %s100, %s101
      %p113 = scmp.eq.s32.totalorder %s35, 1
      %p114 = por %p112, %p113
      %p116 = scmp.ne.s32.totalorder %s101, %s115
      %p117 = scmp.eq.s32.totalorder %s35, 0
      %p118 = por %p116, %p117
      %s120 = sadd.s32 %s119, 1
      %p123 = scmp.eq.s32.totalorder %s29, 1
      %p124 = scmp.ne.s32.totalorder %s119, %s121
      %p125 = scmp.eq.s32.totalorder %s29, 0
      %p126 = por %p124, %p125
      %p127 = scmp.ne.s32.totalorder %s119, %s121
      %p128 = scmp.eq.s32.totalorder %s34, 1
      %p129 = por %p127, %p128
      %p130 = scmp.ne.s32.totalorder %s121, %s122
      %p131 = scmp.eq.s32.totalorder %s34, 0
      %p132 = por %p130, %p131
      %p133 = scmp.ne.s32.totalorder %s121, %s122
      %p134 = scmp.eq.s32.totalorder %s35, 1
      %p135 = por %p133, %p134
      %p137 = scmp.ne.s32.totalorder %s122, %s136
      %p138 = scmp.eq.s32.totalorder %s35, 0
      %p139 = por %p137, %p138
      %s141 = sadd.s32 %s140, 1
      %p144 = scmp.eq.s32.totalorder %s29, 1
      %p145 = scmp.ne.s32.totalorder %s140, %s142
      %p146 = scmp.eq.s32.totalorder %s29, 0
      %p147 = por %p145, %p146
      %p148 = scmp.ne.s32.totalorder %s140, %s142
      %p149 = scmp.eq.s32.totalorder %s34, 1
      %p150 = por %p148, %p149
      %p151 = scmp.ne.s32.totalorder %s142, %s143
      %p152 = scmp.eq.s32.totalorder %s34, 0
      %p153 = por %p151, %p152
      %p154 = scmp.ne.s32.totalorder %s142, %s143
      %p155 = scmp.eq.s32.totalorder %s35, 1
      %p156 = por %p154, %p155
      %p158 = scmp.ne.s32.totalorder %s143, %s157
      %p159 = scmp.eq.s32.totalorder %s35, 0
      %p160 = por %p158, %p159
      %s162 = sadd.s32 %s161, 1
      %p165 = scmp.eq.s32.totalorder %s29, 1
      %p166 = scmp.ne.s32.totalorder %s161, %s163
      %p167 = scmp.eq.s32.totalorder %s29, 0
      %p168 = por %p166, %p167
      %p169 = scmp.ne.s32.totalorder %s161, %s163
      %p170 = scmp.eq.s32.totalorder %s34, 1
      %p171 = por %p169, %p170
      %p172 = scmp.ne.s32.totalorder %s163, %s164
      %p173 = scmp.eq.s32.totalorder %s34, 0
      %p174 = por %p172, %p173
      %p175 = scmp.ne.s32.totalorder %s163, %s164
      %p176 = scmp.eq.s32.totalorder %s35, 1
      %p177 = por %p175, %p176
      %p179 = scmp.ne.s32.totalorder %s164, %s178
      %p180 = scmp.eq.s32.totalorder %s35, 0
      %p181 = por %p179, %p180
      %s183 = sadd.s32 %s182, 1
      %p186 = scmp.eq.s32.totalorder %s29, 1
      %p187 = scmp.ne.s32.totalorder %s182, %s184
      %p188 = scmp.eq.s32.totalorder %s29, 0
      %p189 = por %p187, %p188
      %p190 = scmp.ne.s32.totalorder %s182, %s184
      %p191 = scmp.eq.s32.totalorder %s34, 1
      %p192 = por %p190, %p191
      %p193 = scmp.ne.s32.totalorder %s184, %s185
      %p194 = scmp.eq.s32.totalorder %s34, 0
      %p195 = por %p193, %p194
      %p196 = scmp.ne.s32.totalorder %s184, %s185
      %p197 = scmp.eq.s32.totalorder %s35, 1
      %p198 = por %p196, %p197
      %p200 = scmp.ne.s32.totalorder %s185, %s199
      %p201 = scmp.eq.s32.totalorder %s35, 0
      %p202 = por %p200, %p201
      %s204 = sadd.s32 %s203, 1
      %p207 = scmp.eq.s32.totalorder %s29, 1
      %p208 = scmp.ne.s32.totalorder %s203, %s205
      %p209 = scmp.eq.s32.totalorder %s29, 0
      %p210 = por %p208, %p209
      %p211 = scmp.ne.s32.totalorder %s203, %s205
      %p212 = scmp.eq.s32.totalorder %s34, 1
      %p213 = por %p211, %p212
      %p214 = scmp.ne.s32.totalorder %s205, %s206
      %p215 = scmp.eq.s32.totalorder %s34, 0
      %p216 = por %p214, %p215
      %p217 = scmp.ne.s32.totalorder %s205, %s206
      %p218 = scmp.eq.s32.totalorder %s35, 1
      %p219 = por %p217, %p218
      %p221 = scmp.ne.s32.totalorder %s206, %s220
      %p222 = scmp.eq.s32.totalorder %s35, 0
      %p223 = por %p221, %p222
      %s224 = ssub.s32 %s36, %s48
      %s225 = ssub.s32 %s37, %s44
      %s226 = sor.u32 %s224, %s225
      %p227 = scmp.eq.s32.totalorder %s226, 0
      %s229 = sadd.s32 %s228, 1
      %s230 = scalar_select %p227, %s228, %s229
      %p233 = pneg %p227
      %p234 = scmp.eq.s32.totalorder %s29, 1
      %p235 = por %p233, %p234
      %p236 = scmp.ne.s32.totalorder %s228, %s231
      %p237 = scmp.eq.s32.totalorder %s29, 0
      %p238 = por %p236, %p237
      %p239 = scmp.ne.s32.totalorder %s228, %s231
      %p240 = scmp.eq.s32.totalorder %s34, 1
      %p241 = por %p239, %p240
      %p242 = scmp.ne.s32.totalorder %s231, %s232
      %p243 = scmp.eq.s32.totalorder %s34, 0
      %p244 = por %p242, %p243
      %p245 = scmp.ne.s32.totalorder %s231, %s232
      %p246 = scmp.eq.s32.totalorder %s35, 1
      %p247 = por %p245, %p246
      %p249 = scmp.ne.s32.totalorder %s232, %s248
      %p250 = scmp.eq.s32.totalorder %s35, 0
      %p251 = por %p249, %p250
      %s252 = ssub.s32 %s36, %s48
      %s253 = ssub.s32 %s37, %s44
      %s254 = sor.u32 %s252, %s253
      %p255 = scmp.eq.s32.totalorder %s254, 0
      %s257 = sadd.s32 %s256, 1
      %s258 = scalar_select %p255, %s256, %s257
      %p261 = pneg %p255
      %p262 = scmp.eq.s32.totalorder %s29, 1
      %p263 = por %p261, %p262
      %p264 = scmp.ne.s32.totalorder %s256, %s259
      %p265 = scmp.eq.s32.totalorder %s29, 0
      %p266 = por %p264, %p265
      %p267 = scmp.ne.s32.totalorder %s256, %s259
      %p268 = scmp.eq.s32.totalorder %s34, 1
      %p269 = por %p267, %p268
      %p270 = scmp.ne.s32.totalorder %s259, %s260
      %p271 = scmp.eq.s32.totalorder %s34, 0
      %p272 = por %p270, %p271
      %p273 = scmp.ne.s32.totalorder %s259, %s260
      %p274 = scmp.eq.s32.totalorder %s35, 1
      %p275 = por %p273, %p274
      %p277 = scmp.ne.s32.totalorder %s260, %s276
      %p278 = scmp.eq.s32.totalorder %s35, 0
      %p279 = por %p277, %p278
      %s280 = ssub.s32 %s36, %s48
      %s281 = ssub.s32 %s37, %s44
      %s282 = sor.u32 %s280, %s281
      %p283 = scmp.eq.s32.totalorder %s282, 0
      %s285 = sadd.s32 %s284, 1
      %s286 = scalar_select %p283, %s284, %s285
      %p289 = pneg %p283
      %p290 = scmp.eq.s32.totalorder %s29, 1
      %p291 = por %p289, %p290
      %p292 = scmp.ne.s32.totalorder %s284, %s287
      %p293 = scmp.eq.s32.totalorder %s29, 0
      %p294 = por %p292, %p293
      %p295 = scmp.ne.s32.totalorder %s284, %s287
      %p296 = scmp.eq.s32.totalorder %s34, 1
      %p297 = por %p295, %p296
      %p298 = scmp.ne.s32.totalorder %s287, %s288
      %p299 = scmp.eq.s32.totalorder %s34, 0
      %p300 = por %p298, %p299
      %p301 = scmp.ne.s32.totalorder %s287, %s288
      %p302 = scmp.eq.s32.totalorder %s35, 1
      %p303 = por %p301, %p302
      %p305 = scmp.ne.s32.totalorder %s288, %s304
      %p306 = scmp.eq.s32.totalorder %s35, 0
      %p307 = por %p305, %p306
      %s308 = ssub.s32 %s36, %s48
      %s309 = ssub.s32 %s37, %s44
      %s310 = sor.u32 %s308, %s309
      %p311 = scmp.eq.s32.totalorder %s310, 0
      %s313 = sadd.s32 %s312, 1
      %s314 = scalar_select %p311, %s312, %s313
      %p317 = pneg %p311
      %p318 = scmp.eq.s32.totalorder %s29, 1
      %p319 = por %p317, %p318
      %p320 = scmp.ne.s32.totalorder %s312, %s315
      %p321 = scmp.eq.s32.totalorder %s29, 0
      %p322 = por %p320, %p321
      %p323 = scmp.ne.s32.totalorder %s312, %s315
      %p324 = scmp.eq.s32.totalorder %s34, 1
      %p325 = por %p323, %p324
      %p326 = scmp.ne.s32.totalorder %s315, %s316
      %p327 = scmp.eq.s32.totalorder %s34, 0
      %p328 = por %p326, %p327
      %p329 = scmp.ne.s32.totalorder %s315, %s316
      %p330 = scmp.eq.s32.totalorder %s35, 1
      %p331 = por %p329, %p330
      %p333 = scmp.ne.s32.totalorder %s316, %s332
      %p334 = scmp.eq.s32.totalorder %s35, 0
      %p335 = por %p333, %p334
      %p336 = scmp.le.s32.totalorder 1, %s29
      %p337 = scmp.lt.s32.totalorder %s29, 3
      %p338 = pnand %p336, %p337
      %p339 = pneg %p338
      // Predicated region
      $region9: #{enhancement_pipeline.1} parent=5 // pred_check
        _
      $region10: #{enhancement_pipeline.1} parent=5 // pred_check_branch
        %341 = sbr.rel (%p338) target = $region12
      $region11: #{enhancement_pipeline.1} parent=5 // pred_region
        %s342 = ssub.s32 %s29, 1
        // Predicated region
        $region13: #{enhancement_pipeline.1} parent=11 // pred_check
          %p343 = pneg %p90
        $region14: #{enhancement_pipeline.1} parent=11 // pred_check_branch
          %345 = sbr.rel (%p343) target = $region16
        $region15: #{enhancement_pipeline.1} parent=11 // pred_region
          %347 = vsyncadd [#allocation5], 0
          %s348 = sshll.u32 %s2, 4
          %s349 = int_to_ptr.hbm [resolvable:$true] %s348
          %s350 = sshll.u32 [#allocation4], 4
          %s351 = int_to_ptr.vmem [resolvable:$true] %s350
          %356 = dma.hbm_to_vmem [thread:$0]  %s349, 2048, %s351, [#allocation5], 128, 128, 8
        $region16: #{enhancement_pipeline.1} parent=11 // pred_fallthru
          _
        // Predicated region
        $region17: #{enhancement_pipeline.1} parent=11 // pred_check
          %p357 = pneg %p111
        $region18: #{enhancement_pipeline.1} parent=11 // pred_check_branch
          %359 = sbr.rel (%p357) target = $region20
        $region19: #{enhancement_pipeline.1} parent=11 // pred_region
          %361 = vsyncadd [#allocation7], 0
          %s362 = sshll.u32 %s3, 4
          %s363 = int_to_ptr.hbm [resolvable:$true] %s362
          %s364 = sshll.u32 [#allocation6], 4
          %s365 = int_to_ptr.vmem [resolvable:$true] %s364
          %370 = dma.hbm_to_vmem [thread:$0]  %s363, 2048, %s365, [#allocation7], 64, 64, 4
        $region20: #{enhancement_pipeline.1} parent=11 // pred_fallthru
          _
        // Predicated region
        $region21: #{enhancement_pipeline.1} parent=11 // pred_check
          %p371 = pneg %p132
        $region22: #{enhancement_pipeline.1} parent=11 // pred_check_branch
          %373 = sbr.rel (%p371) target = $region24
        $region23: #{enhancement_pipeline.1} parent=11 // pred_region
          _
        $region24: #{enhancement_pipeline.1} parent=11 // pred_fallthru
          _
        // Predicated region
        $region25: #{enhancement_pipeline.1} parent=11 // pred_check
          %p374 = pneg %p153
        $region26: #{enhancement_pipeline.1} parent=11 // pred_check_branch
          %376 = sbr.rel (%p374) target = $region28
        $region27: #{enhancement_pipeline.1} parent=11 // pred_region
          _
        $region28: #{enhancement_pipeline.1} parent=11 // pred_fallthru
          _
        // Predicated region
        $region29: #{enhancement_pipeline.1} parent=11 // pred_check
          %p377 = pneg %p174
        $region30: #{enhancement_pipeline.1} parent=11 // pred_check_branch
          %379 = sbr.rel (%p377) target = $region32
        $region31: #{enhancement_pipeline.1} parent=11 // pred_region
          _
        $region32: #{enhancement_pipeline.1} parent=11 // pred_fallthru
          _
        // Predicated region
        $region33: #{enhancement_pipeline.1} parent=11 // pred_check
          %p380 = pneg %p195
        $region34: #{enhancement_pipeline.1} parent=11 // pred_check_branch
          %382 = sbr.rel (%p380) target = $region36
        $region35: #{enhancement_pipeline.1} parent=11 // pred_region
          _
        $region36: #{enhancement_pipeline.1} parent=11 // pred_fallthru
          _
        // Predicated region
        $region37: #{enhancement_pipeline.1} parent=11 // pred_check
          %p383 = pneg %p216
        $region38: #{enhancement_pipeline.1} parent=11 // pred_check_branch
          %385 = sbr.rel (%p383) target = $region40
        $region39: #{enhancement_pipeline.1} parent=11 // pred_region
          _
        $region40: #{enhancement_pipeline.1} parent=11 // pred_fallthru
          _
      $region12: #{enhancement_pipeline.1} parent=5 // pred_fallthru
        _
      %p386 = scmp.lt.s32.totalorder %s29, 2
      // Predicated region
      $region41: #{enhancement_pipeline.1} parent=5 // pred_check
        %p387 = pneg %p386
      $region42: #{enhancement_pipeline.1} parent=5 // pred_check_branch
        %389 = sbr.rel (%p387) target = $region44
      $region43: #{enhancement_pipeline.1} parent=5 // pred_region
        // Predicated region
        $region45: #{enhancement_pipeline.1} parent=43 // pred_check
          %p390 = pneg %p63
        $region46: #{enhancement_pipeline.1} parent=43 // pred_check_branch
          %392 = sbr.rel (%p390) target = $region48
        $region47: #{enhancement_pipeline.1} parent=43 // pred_region
          %s393 = smul.u32 2, %s37
          %p394 = scmp.lt.s32.totalorder %s36, 1
          %s395 = scalar_select %p394, %s36, 1
          %p396 = scmp.lt.s32.totalorder %s393, 1
          %s397 = scalar_select %p396, %s393, 1
          %s398 = smul.addr %s395, 2
          %s399 = sadd.s32 %s397, %s398
          %s400 = smul.addr %s399, 4
          %s401 = scalar_lea.vmem %s1, %s400
          %s402 = smul.u32 2, %s37
        $region48: #{enhancement_pipeline.1} parent=43 // pred_fallthru
          _
      $region44: #{enhancement_pipeline.1} parent=5 // pred_fallthru
        _
      %p403 = scmp.le.s32.totalorder 1, %s29
      %p404 = scmp.lt.s32.totalorder %s29, 3
      %p405 = pnand %p403, %p404
      %p406 = pneg %p405
      // Predicated region
      $region49: #{enhancement_pipeline.1} parent=5 // pred_check
        _
      $region50: #{enhancement_pipeline.1} parent=5 // pred_check_branch
        %408 = sbr.rel (%p405) target = $region52
      $region51: #{enhancement_pipeline.1} parent=5 // pred_region
        %s409 = ssub.s32 %s29, 1
        // Predicated region
        $region53: #{enhancement_pipeline.1} parent=51 // pred_check
          %p410 = pneg %p90
        $region54: #{enhancement_pipeline.1} parent=51 // pred_check_branch
          %412 = sbr.rel (%p410) target = $region56
        $region55: #{enhancement_pipeline.1} parent=51 // pred_region
          %414 = dma.done [#allocation5], 2048
        $region56: #{enhancement_pipeline.1} parent=51 // pred_fallthru
          _
        // Predicated region
        $region57: #{enhancement_pipeline.1} parent=51 // pred_check
          %p415 = pneg %p111
        $region58: #{enhancement_pipeline.1} parent=51 // pred_check_branch
          %417 = sbr.rel (%p415) target = $region60
        $region59: #{enhancement_pipeline.1} parent=51 // pred_region
          %419 = dma.done [#allocation7], 2048
        $region60: #{enhancement_pipeline.1} parent=51 // pred_fallthru
          _
        %s420 = smul.u32 2, %s39
        %p421 = scmp.lt.s32.totalorder %s38, 1
        %s422 = scalar_select %p421, %s38, 1
        %p423 = scmp.lt.s32.totalorder %s420, 1
        %s424 = scalar_select %p423, %s420, 1
        %s425 = smul.addr %s422, 2
        %s426 = sadd.s32 %s424, %s425
        %s427 = smul.addr %s426, 4
        %s428 = scalar_lea.vmem %s1, %s427
        %p429 = pneg %p69
        %p430 = pneg %p66
        %p431 = pneg %p90
        %p432 = pneg %p87
        %p433 = pneg %p111
        %p434 = pneg %p108
        %p435 = pneg %p132
        %p436 = pneg %p129
        %p437 = pneg %p153
        %p438 = pneg %p150
        %p439 = pneg %p174
        %p440 = pneg %p171
        %p441 = pneg %p195
        %p442 = pneg %p192
        %p443 = pneg %p216
        %p444 = pneg %p213
        %p445 = pneg %p244
        %p446 = pneg %p241
        %s447 = smul.u32 2, %s39
        %p448 = scmp.lt.s32.totalorder %s38, 1
        %s449 = scalar_select %p448, %s38, 1
        %p450 = scmp.lt.s32.totalorder %s447, 1
        %s451 = scalar_select %p450, %s447, 1
        %s452 = smul.addr %s449, 2
        %s453 = sadd.s32 %s451, %s452
        %s454 = smul.addr %s453, 4
        %s455 = scalar_lea.vmem %s9, %s454
        %p456 = pneg %p272
        %p457 = pneg %p269
        %s458 = smul.u32 2, %s39
        %p459 = scmp.lt.s32.totalorder %s38, 1
        %s460 = scalar_select %p459, %s38, 1
        %p461 = scmp.lt.s32.totalorder %s458, 1
        %s462 = scalar_select %p461, %s458, 1
        %s463 = smul.addr %s460, 2
        %s464 = sadd.s32 %s462, %s463
        %s465 = smul.addr %s464, 4
        %s466 = scalar_lea.vmem %s10, %s465
        %p467 = pneg %p300
        %p468 = pneg %p297
        %s469 = smul.u32 2, %s39
        %p470 = scmp.lt.s32.totalorder %s38, 1
        %s471 = scalar_select %p470, %s38, 1
        %p472 = scmp.lt.s32.totalorder %s469, 1
        %s473 = scalar_select %p472, %s469, 1
        %s474 = smul.addr %s471, 2
        %s475 = sadd.s32 %s473, %s474
        %s476 = smul.addr %s475, 4
        %s477 = scalar_lea.vmem %s11, %s476
        %p478 = pneg %p328
        %p479 = pneg %p325
        %s480 = smul.u32 2, %s39
        %p481 = scmp.lt.s32.totalorder %s38, 1
        %s482 = scalar_select %p481, %s38, 1
        %p483 = scmp.lt.s32.totalorder %s480, 1
        %s484 = scalar_select %p483, %s480, 1
        %s485 = smul.addr %s482, 2
        %s486 = sadd.s32 %s484, %s485
        %s487 = smul.addr %s486, 4
        %s488 = scalar_lea.vmem %s12, %s487
        %s489 = smul.u32 2, %s39
        %p490 = scmp.lt.s32.totalorder %s38, 1
        %s491 = scalar_select %p490, %s38, 1
        %p492 = scmp.lt.s32.totalorder %s489, 1
        %s493 = scalar_select %p492, %s489, 1
        %s494 = smul.addr %s491, 2
        %s495 = sadd.s32 %s493, %s494
        %s496 = smul.addr %s495, 4
        %s497 = scalar_lea.vmem %s1, %s496
        %s498 = smul.u32 2, %s39
        %s499 = smul.u32 2, %s39
        %p500 = scmp.lt.s32.totalorder %s38, 1
        %s501 = scalar_select %p500, %s38, 1
        %p502 = scmp.lt.s32.totalorder %s499, 1
        %s503 = scalar_select %p502, %s499, 1
        %s504 = smul.addr %s501, 2
        %s505 = sadd.s32 %s503, %s504
        %s506 = smul.addr %s505, 4
        %s507 = scalar_lea.vmem %s9, %s506
        %s508 = smul.u32 2, %s39
        %s509 = smul.u32 2, %s39
        %p510 = scmp.lt.s32.totalorder %s38, 1
        %s511 = scalar_select %p510, %s38, 1
        %p512 = scmp.lt.s32.totalorder %s509, 1
        %s513 = scalar_select %p512, %s509, 1
        %s514 = smul.addr %s511, 2
        %s515 = sadd.s32 %s513, %s514
        %s516 = smul.addr %s515, 4
        %s517 = scalar_lea.vmem %s10, %s516
        %s518 = smul.u32 2, %s39
        %s519 = smul.u32 2, %s39
        %p520 = scmp.lt.s32.totalorder %s38, 1
        %s521 = scalar_select %p520, %s38, 1
        %p522 = scmp.lt.s32.totalorder %s519, 1
        %s523 = scalar_select %p522, %s519, 1
        %s524 = smul.addr %s521, 2
        %s525 = sadd.s32 %s523, %s524
        %s526 = smul.addr %s525, 4
        %s527 = scalar_lea.vmem %s11, %s526
        %s528 = smul.u32 2, %s39
        %s529 = smul.u32 2, %s39
        %p530 = scmp.lt.s32.totalorder %s38, 1
        %s531 = scalar_select %p530, %s38, 1
        %p532 = scmp.lt.s32.totalorder %s529, 1
        %s533 = scalar_select %p532, %s529, 1
        %s534 = smul.addr %s531, 2
        %s535 = sadd.s32 %s533, %s534
        %s536 = smul.addr %s535, 4
        %s537 = scalar_lea.vmem %s12, %s536
        %s538 = smul.u32 2, %s39
        %v539 = vld [vmem:[%s497] sm:$0xf]
        %v540 = vld [vmem:[%s497 + $0x4] sm:$0xf]
        %v541 = vld [vmem:[#allocation4] sm:$0xff]
        %v542 = vld [vmem:[#allocation4 + $0x8] sm:$0xff]
        %v543 = vld [vmem:[#allocation4 + $0x10] sm:$0xff]
        %v544 = vld [vmem:[#allocation4 + $0x18] sm:$0xff]
        %v545 = vld [vmem:[#allocation4 + $0x20] sm:$0xff]
        %v546 = vld [vmem:[#allocation4 + $0x28] sm:$0xff]
        %v547 = vld [vmem:[#allocation4 + $0x30] sm:$0xff]
        %v548 = vld [vmem:[#allocation4 + $0x38] sm:$0xff]
        %v549 = vld [vmem:[#allocation4 + $0x40] sm:$0xff]
        %v550 = vld [vmem:[#allocation4 + $0x48] sm:$0xff]
        %v551 = vld [vmem:[#allocation4 + $0x50] sm:$0xff]
        %v552 = vld [vmem:[#allocation4 + $0x58] sm:$0xff]
        %v553 = vld [vmem:[#allocation4 + $0x60] sm:$0xff]
        %v554 = vld [vmem:[#allocation4 + $0x68] sm:$0xff]
        %v555 = vld [vmem:[#allocation4 + $0x70] sm:$0xff]
        %v556 = vld [vmem:[#allocation4 + $0x78] sm:$0xff]
        %v559 = vunpack.c.l.b16 %v539
        %v560 = vunpack.c.l.b16 %v540
        %v561 = vpack.c.b16 %v560, %v559
        %v579 = vunpack.c.l.b16 %v541
        %v580 = vunpack.c.h.b16 %v541
        %v581 = vunpack.c.l.b16 %v542
        %v582 = vunpack.c.h.b16 %v542
        %v583 = vunpack.c.l.b16 %v543
        %v584 = vunpack.c.h.b16 %v543
        %v585 = vunpack.c.l.b16 %v544
        %v586 = vunpack.c.h.b16 %v544
        %v587 = vunpack.c.l.b16 %v545
        %v588 = vunpack.c.h.b16 %v545
        %v589 = vunpack.c.l.b16 %v546
        %v590 = vunpack.c.h.b16 %v546
        %v591 = vunpack.c.l.b16 %v547
        %v592 = vunpack.c.h.b16 %v547
        %v593 = vunpack.c.l.b16 %v548
        %v594 = vunpack.c.h.b16 %v548
        %v595 = vunpack.c.l.b16 %v549
        %v596 = vunpack.c.h.b16 %v549
        %v597 = vunpack.c.l.b16 %v550
        %v598 = vunpack.c.h.b16 %v550
        %v599 = vunpack.c.l.b16 %v551
        %v600 = vunpack.c.h.b16 %v551
        %v601 = vunpack.c.l.b16 %v552
        %v602 = vunpack.c.h.b16 %v552
        %v603 = vunpack.c.l.b16 %v553
        %v604 = vunpack.c.h.b16 %v553
        %v605 = vunpack.c.l.b16 %v554
        %v606 = vunpack.c.h.b16 %v554
        %v607 = vunpack.c.l.b16 %v555
        %v608 = vunpack.c.h.b16 %v555
        %v609 = vunpack.c.l.b16 %v556
        %v610 = vunpack.c.h.b16 %v556
        %v611 = vpack.c.b16 %v581, %v579
        %v612 = vpack.c.b16 %v582, %v580
        %v613 = vpack.c.b16 %v585, %v583
        %v614 = vpack.c.b16 %v586, %v584
        %v615 = vpack.c.b16 %v589, %v587
        %v616 = vpack.c.b16 %v590, %v588
        %v617 = vpack.c.b16 %v593, %v591
        %v618 = vpack.c.b16 %v594, %v592
        %v619 = vpack.c.b16 %v597, %v595
        %v620 = vpack.c.b16 %v598, %v596
        %v621 = vpack.c.b16 %v601, %v599
        %v622 = vpack.c.b16 %v602, %v600
        %v623 = vpack.c.b16 %v605, %v603
        %v624 = vpack.c.b16 %v606, %v604
        %v625 = vpack.c.b16 %v609, %v607
        %v626 = vpack.c.b16 %v610, %v608
        %643 = vmatpush.bf16.msra.mxu0 %v625
        %644 = vmatpush.bf16.msra.mxu0 %v623
        %645 = vmatpush.bf16.msra.mxu0 %v621
        %646 = vmatpush.bf16.msra.mxu0 %v619
        %647 = vmatpush.bf16.msra.mxu0 %v617
        %648 = vmatpush.bf16.msra.mxu0 %v615
        %649 = vmatpush.bf16.msra.mxu0 %v613
        %650 = vmatpush.bf16.msra.mxu0 %v611
        %651 = vmatmul.bf16.gmra.mxu0 %v561
        %v652 = vpop.f32.mrf.mxu0
        %v653 = vadd.f32 0.0, %v652
        %v654 = vpop.f32.mrf.mxu0
        %v655 = vadd.f32 0.0, %v654
        %656 = vdwg.mxu0
        %657 = vmatpush.bf16.msra.mxu0 %v626
        %658 = vmatpush.bf16.msra.mxu0 %v624
        %659 = vmatpush.bf16.msra.mxu0 %v622
        %660 = vmatpush.bf16.msra.mxu0 %v620
        %661 = vmatpush.bf16.msra.mxu0 %v618
        %662 = vmatpush.bf16.msra.mxu0 %v616
        %663 = vmatpush.bf16.msra.mxu0 %v614
        %664 = vmatpush.bf16.msra.mxu0 %v612
        %665 = vmatmul.bf16.gmra.mxu0 %v561
        %v666 = vpop.f32.mrf.mxu0
        %v667 = vadd.f32 0.0, %v666
        %v668 = vpop.f32.mrf.mxu0
        %v669 = vadd.f32 0.0, %v668
        %670 = vdwg.mxu0
        %v671 = vpack.c.bf16 %v667, %v667
        %v672 = vpack.c.bf16 %v669, %v669
        %673 = vst [vmem:[%s507] sm:$0xf] %v671
        %674 = vst [vmem:[%s507 + $0x4] sm:$0xf] %v672
        %v675 = vpack.c.bf16 %v655, %v653
        %v676 = vld [vmem:[#allocation6] sm:$0xf]
        %v677 = vld [vmem:[#allocation6 + $0x4] sm:$0xf]
        %v678 = vld [vmem:[#allocation6 + $0x8] sm:$0xf]
        %v679 = vld [vmem:[#allocation6 + $0xc] sm:$0xf]
        %v680 = vld [vmem:[#allocation6 + $0x10] sm:$0xf]
        %v681 = vld [vmem:[#allocation6 + $0x14] sm:$0xf]
        %v682 = vld [vmem:[#allocation6 + $0x18] sm:$0xf]
        %v683 = vld [vmem:[#allocation6 + $0x1c] sm:$0xf]
        %v684 = vld [vmem:[#allocation6 + $0x20] sm:$0xf]
        %v685 = vld [vmem:[#allocation6 + $0x24] sm:$0xf]
        %v686 = vld [vmem:[#allocation6 + $0x28] sm:$0xf]
        %v687 = vld [vmem:[#allocation6 + $0x2c] sm:$0xf]
        %v688 = vld [vmem:[#allocation6 + $0x30] sm:$0xf]
        %v689 = vld [vmem:[#allocation6 + $0x34] sm:$0xf]
        %v690 = vld [vmem:[#allocation6 + $0x38] sm:$0xf]
        %v691 = vld [vmem:[#allocation6 + $0x3c] sm:$0xf]
        %v692 = vld [vmem:[%s4] sm:$0x1]
        %v694 = vperm.slane %v692, 0
        %v712 = vunpack.c.l.b16 %v676
        %v713 = vunpack.c.l.b16 %v677
        %v714 = vunpack.c.l.b16 %v678
        %v715 = vunpack.c.l.b16 %v679
        %v716 = vunpack.c.l.b16 %v680
        %v717 = vunpack.c.l.b16 %v681
        %v718 = vunpack.c.l.b16 %v682
        %v719 = vunpack.c.l.b16 %v683
        %v720 = vunpack.c.l.b16 %v684
        %v721 = vunpack.c.l.b16 %v685
        %v722 = vunpack.c.l.b16 %v686
        %v723 = vunpack.c.l.b16 %v687
        %v724 = vunpack.c.l.b16 %v688
        %v725 = vunpack.c.l.b16 %v689
        %v726 = vunpack.c.l.b16 %v690
        %v727 = vunpack.c.l.b16 %v691
        %v728 = vpack.c.b16 %v713, %v712
        %v729 = vpack.c.b16 %v715, %v714
        %v730 = vpack.c.b16 %v717, %v716
        %v731 = vpack.c.b16 %v719, %v718
        %v732 = vpack.c.b16 %v721, %v720
        %v733 = vpack.c.b16 %v723, %v722
        %v734 = vpack.c.b16 %v725, %v724
        %v735 = vpack.c.b16 %v727, %v726
        %744 = vmatpush.bf16.msra.mxu0 %v735
        %745 = vmatpush.bf16.msra.mxu0 %v734
        %746 = vmatpush.bf16.msra.mxu0 %v733
        %747 = vmatpush.bf16.msra.mxu0 %v732
        %748 = vmatpush.bf16.msra.mxu0 %v731
        %749 = vmatpush.bf16.msra.mxu0 %v730
        %750 = vmatpush.bf16.msra.mxu0 %v729
        %751 = vmatpush.bf16.msra.mxu0 %v728
        %752 = vmatmul.bf16.gmra.mxu0 %v675
        %v753 = vpop.f32.mrf.mxu0
        %v754 = vadd.f32 %v694, %v753
        %v755 = vpop.f32.mrf.mxu0
        %v756 = vadd.f32 %v694, %v755
        %757 = vdwg.mxu0
        %v758 = vmax.f32 %v754, 0.0
        %v759 = vmax.f32 %v756, 0.0
        %v760 = vpack.c.bf16 %v759, %v758
        %v761 = vld [vmem:[%s5] sm:$0xf]
        %v762 = vld [vmem:[%s5 + $0x4] sm:$0xf]
        %v763 = vld [vmem:[%s5 + $0x8] sm:$0xf]
        %v764 = vld [vmem:[%s5 + $0xc] sm:$0xf]
        %v765 = vld [vmem:[%s5 + $0x10] sm:$0xf]
        %v766 = vld [vmem:[%s5 + $0x14] sm:$0xf]
        %v767 = vld [vmem:[%s5 + $0x18] sm:$0xf]
        %v768 = vld [vmem:[%s5 + $0x1c] sm:$0xf]
        %v769 = vld [vmem:[%s5 + $0x20] sm:$0xf]
        %v770 = vld [vmem:[%s5 + $0x24] sm:$0xf]
        %v771 = vld [vmem:[%s5 + $0x28] sm:$0xf]
        %v772 = vld [vmem:[%s5 + $0x2c] sm:$0xf]
        %v773 = vld [vmem:[%s5 + $0x30] sm:$0xf]
        %v774 = vld [vmem:[%s5 + $0x34] sm:$0xf]
        %v775 = vld [vmem:[%s5 + $0x38] sm:$0xf]
        %v776 = vld [vmem:[%s5 + $0x3c] sm:$0xf]
        %v777 = vld [vmem:[%s6] sm:$0x1]
        %v779 = vperm.slane %v777, 0
        %v797 = vunpack.c.l.b16 %v761
        %v798 = vunpack.c.l.b16 %v762
        %v799 = vunpack.c.l.b16 %v763
        %v800 = vunpack.c.l.b16 %v764
        %v801 = vunpack.c.l.b16 %v765
        %v802 = vunpack.c.l.b16 %v766
        %v803 = vunpack.c.l.b16 %v767
        %v804 = vunpack.c.l.b16 %v768
        %v805 = vunpack.c.l.b16 %v769
        %v806 = vunpack.c.l.b16 %v770
        %v807 = vunpack.c.l.b16 %v771
        %v808 = vunpack.c.l.b16 %v772
        %v809 = vunpack.c.l.b16 %v773
        %v810 = vunpack.c.l.b16 %v774
        %v811 = vunpack.c.l.b16 %v775
        %v812 = vunpack.c.l.b16 %v776
        %v813 = vpack.c.b16 %v798, %v797
        %v814 = vpack.c.b16 %v800, %v799
        %v815 = vpack.c.b16 %v802, %v801
        %v816 = vpack.c.b16 %v804, %v803
        %v817 = vpack.c.b16 %v806, %v805
        %v818 = vpack.c.b16 %v808, %v807
        %v819 = vpack.c.b16 %v810, %v809
        %v820 = vpack.c.b16 %v812, %v811
        %829 = vmatpush.bf16.msra.mxu0 %v820
        %830 = vmatpush.bf16.msra.mxu0 %v819
        %831 = vmatpush.bf16.msra.mxu0 %v818
        %832 = vmatpush.bf16.msra.mxu0 %v817
        %833 = vmatpush.bf16.msra.mxu0 %v816
        %834 = vmatpush.bf16.msra.mxu0 %v815
        %835 = vmatpush.bf16.msra.mxu0 %v814
        %836 = vmatpush.bf16.msra.mxu0 %v813
        %837 = vmatmul.bf16.gmra.mxu0 %v760
        %v838 = vpop.f32.mrf.mxu0
        %v839 = vadd.f32 %v779, %v838
        %v840 = vpop.f32.mrf.mxu0
        %v841 = vadd.f32 %v779, %v840
        %842 = vdwg.mxu0
        %v843 = vpack.c.bf16 %v839, %v839
        %v844 = vpack.c.bf16 %v841, %v841
        %845 = vst [vmem:[%s527] sm:$0xf] %v843
        %846 = vst [vmem:[%s527 + $0x4] sm:$0xf] %v844
        %s847 = scalar_lea.vmem [#allocation6], 64
        %v848 = vld [vmem:[%s847] sm:$0xf]
        %v849 = vld [vmem:[%s847 + $0x4] sm:$0xf]
        %v850 = vld [vmem:[%s847 + $0x8] sm:$0xf]
        %v851 = vld [vmem:[%s847 + $0xc] sm:$0xf]
        %v852 = vld [vmem:[%s847 + $0x10] sm:$0xf]
        %v853 = vld [vmem:[%s847 + $0x14] sm:$0xf]
        %v854 = vld [vmem:[%s847 + $0x18] sm:$0xf]
        %v855 = vld [vmem:[%s847 + $0x1c] sm:$0xf]
        %v856 = vld [vmem:[%s847 + $0x20] sm:$0xf]
        %v857 = vld [vmem:[%s847 + $0x24] sm:$0xf]
        %v858 = vld [vmem:[%s847 + $0x28] sm:$0xf]
        %v859 = vld [vmem:[%s847 + $0x2c] sm:$0xf]
        %v860 = vld [vmem:[%s847 + $0x30] sm:$0xf]
        %v861 = vld [vmem:[%s847 + $0x34] sm:$0xf]
        %v862 = vld [vmem:[%s847 + $0x38] sm:$0xf]
        %v863 = vld [vmem:[%s847 + $0x3c] sm:$0xf]
        %s864 = scalar_lea.vmem %s4, 1
        %v865 = vld [vmem:[%s864] sm:$0x1]
        %v867 = vperm.slane %v865, 0
        %v871 = vunpack.c.l.b16 %v843
        %v872 = vunpack.c.l.b16 %v844
        %v873 = vpack.c.b16 %v872, %v871
        %v891 = vunpack.c.l.b16 %v848
        %v892 = vunpack.c.l.b16 %v849
        %v893 = vunpack.c.l.b16 %v850
        %v894 = vunpack.c.l.b16 %v851
        %v895 = vunpack.c.l.b16 %v852
        %v896 = vunpack.c.l.b16 %v853
        %v897 = vunpack.c.l.b16 %v854
        %v898 = vunpack.c.l.b16 %v855
        %v899 = vunpack.c.l.b16 %v856
        %v900 = vunpack.c.l.b16 %v857
        %v901 = vunpack.c.l.b16 %v858
        %v902 = vunpack.c.l.b16 %v859
        %v903 = vunpack.c.l.b16 %v860
        %v904 = vunpack.c.l.b16 %v861
        %v905 = vunpack.c.l.b16 %v862
        %v906 = vunpack.c.l.b16 %v863
        %v907 = vpack.c.b16 %v892, %v891
        %v908 = vpack.c.b16 %v894, %v893
        %v909 = vpack.c.b16 %v896, %v895
        %v910 = vpack.c.b16 %v898, %v897
        %v911 = vpack.c.b16 %v900, %v899
        %v912 = vpack.c.b16 %v902, %v901
        %v913 = vpack.c.b16 %v904, %v903
        %v914 = vpack.c.b16 %v906, %v905
        %923 = vmatpush.bf16.msra.mxu0 %v914
        %924 = vmatpush.bf16.msra.mxu0 %v913
        %925 = vmatpush.bf16.msra.mxu0 %v912
        %926 = vmatpush.bf16.msra.mxu0 %v911
        %927 = vmatpush.bf16.msra.mxu0 %v910
        %928 = vmatpush.bf16.msra.mxu0 %v909
        %929 = vmatpush.bf16.msra.mxu0 %v908
        %930 = vmatpush.bf16.msra.mxu0 %v907
        %931 = vmatmul.bf16.gmra.mxu0 %v873
        %v932 = vpop.f32.mrf.mxu0
        %v933 = vadd.f32 %v867, %v932
        %v934 = vpop.f32.mrf.mxu0
        %v935 = vadd.f32 %v867, %v934
        %936 = vdwg.mxu0
        %v937 = vmax.f32 %v933, 0.0
        %v938 = vmax.f32 %v935, 0.0
        %v939 = vpack.c.bf16 %v938, %v937
        %s940 = scalar_lea.vmem %s5, 64
        %v941 = vld [vmem:[%s940] sm:$0xf]
        %v942 = vld [vmem:[%s940 + $0x4] sm:$0xf]
        %v943 = vld [vmem:[%s940 + $0x8] sm:$0xf]
        %v944 = vld [vmem:[%s940 + $0xc] sm:$0xf]
        %v945 = vld [vmem:[%s940 + $0x10] sm:$0xf]
        %v946 = vld [vmem:[%s940 + $0x14] sm:$0xf]
        %v947 = vld [vmem:[%s940 + $0x18] sm:$0xf]
        %v948 = vld [vmem:[%s940 + $0x1c] sm:$0xf]
        %v949 = vld [vmem:[%s940 + $0x20] sm:$0xf]
        %v950 = vld [vmem:[%s940 + $0x24] sm:$0xf]
        %v951 = vld [vmem:[%s940 + $0x28] sm:$0xf]
        %v952 = vld [vmem:[%s940 + $0x2c] sm:$0xf]
        %v953 = vld [vmem:[%s940 + $0x30] sm:$0xf]
        %v954 = vld [vmem:[%s940 + $0x34] sm:$0xf]
        %v955 = vld [vmem:[%s940 + $0x38] sm:$0xf]
        %v956 = vld [vmem:[%s940 + $0x3c] sm:$0xf]
        %s957 = scalar_lea.vmem %s6, 1
        %v958 = vld [vmem:[%s957] sm:$0x1]
        %v960 = vperm.slane %v958, 0
        %v978 = vunpack.c.l.b16 %v941
        %v979 = vunpack.c.l.b16 %v942
        %v980 = vunpack.c.l.b16 %v943
        %v981 = vunpack.c.l.b16 %v944
        %v982 = vunpack.c.l.b16 %v945
        %v983 = vunpack.c.l.b16 %v946
        %v984 = vunpack.c.l.b16 %v947
        %v985 = vunpack.c.l.b16 %v948
        %v986 = vunpack.c.l.b16 %v949
        %v987 = vunpack.c.l.b16 %v950
        %v988 = vunpack.c.l.b16 %v951
        %v989 = vunpack.c.l.b16 %v952
        %v990 = vunpack.c.l.b16 %v953
        %v991 = vunpack.c.l.b16 %v954
        %v992 = vunpack.c.l.b16 %v955
        %v993 = vunpack.c.l.b16 %v956
        %v994 = vpack.c.b16 %v979, %v978
        %v995 = vpack.c.b16 %v981, %v980
        %v996 = vpack.c.b16 %v983, %v982
        %v997 = vpack.c.b16 %v985, %v984
        %v998 = vpack.c.b16 %v987, %v986
        %v999 = vpack.c.b16 %v989, %v988
        %v1000 = vpack.c.b16 %v991, %v990
        %v1001 = vpack.c.b16 %v993, %v992
        %1010 = vmatpush.bf16.msra.mxu0 %v1001
        %1011 = vmatpush.bf16.msra.mxu0 %v1000
        %1012 = vmatpush.bf16.msra.mxu0 %v999
        %1013 = vmatpush.bf16.msra.mxu0 %v998
        %1014 = vmatpush.bf16.msra.mxu0 %v997
        %1015 = vmatpush.bf16.msra.mxu0 %v996
        %1016 = vmatpush.bf16.msra.mxu0 %v995
        %1017 = vmatpush.bf16.msra.mxu0 %v994
        %1018 = vmatmul.bf16.gmra.mxu0 %v939
        %v1019 = vpop.f32.mrf.mxu0
        %v1020 = vadd.f32 %v960, %v1019
        %v1021 = vpop.f32.mrf.mxu0
        %v1022 = vadd.f32 %v960, %v1021
        %1023 = vdwg.mxu0
        %v1024 = vpack.c.bf16 %v1020, %v1020
        %v1025 = vpack.c.bf16 %v1022, %v1022
        %1026 = vst [vmem:[%s537] sm:$0xf] %v1024
        %1027 = vst [vmem:[%s537 + $0x4] sm:$0xf] %v1025
        %s1028 = smul.u32 %s39, 16
        %v1029 = vlaneseq
        %v1030 = vshrl.u32 %v1029, 7
        %v1031 = vadd.s32 %v1030, 8
        %v1032 = vstv %s1028
        %v1033 = vadd.s32 %v1032, %v1030
        %v1034 = vadd.s32 %v1032, %v1031
        %s1035 = sld [smem:[#allocation3 + %s38]]
        %v1036 = vstv %s1035
        %vm1037 = vcmp.lt.s32.totalorder %v1033, %v1036
        %vm1038 = vcmp.lt.s32.totalorder %v1034, %v1036
        %v1039 = vpack.c.bf16 %v1022, %v1020
        %v1040 = vpack.c.bf16 %v669, %v667
        %v1041 = vld [vmem:[%s7] sm:$0xf]
        %v1042 = vld [vmem:[%s7 + $0x4] sm:$0xf]
        %v1043 = vld [vmem:[%s7 + $0x8] sm:$0xf]
        %v1044 = vld [vmem:[%s7 + $0xc] sm:$0xf]
        %v1045 = vld [vmem:[%s7 + $0x10] sm:$0xf]
        %v1046 = vld [vmem:[%s7 + $0x14] sm:$0xf]
        %v1047 = vld [vmem:[%s7 + $0x18] sm:$0xf]
        %v1048 = vld [vmem:[%s7 + $0x1c] sm:$0xf]
        %v1049 = vld [vmem:[%s7 + $0x20] sm:$0xf]
        %v1050 = vld [vmem:[%s7 + $0x24] sm:$0xf]
        %v1051 = vld [vmem:[%s7 + $0x28] sm:$0xf]
        %v1052 = vld [vmem:[%s7 + $0x2c] sm:$0xf]
        %v1053 = vld [vmem:[%s7 + $0x30] sm:$0xf]
        %v1054 = vld [vmem:[%s7 + $0x34] sm:$0xf]
        %v1055 = vld [vmem:[%s7 + $0x38] sm:$0xf]
        %v1056 = vld [vmem:[%s7 + $0x3c] sm:$0xf]
        %v1057 = vld [vmem:[%s7 + $0x40] sm:$0xf]
        %v1058 = vld [vmem:[%s7 + $0x44] sm:$0xf]
        %v1059 = vld [vmem:[%s7 + $0x48] sm:$0xf]
        %v1060 = vld [vmem:[%s7 + $0x4c] sm:$0xf]
        %v1061 = vld [vmem:[%s7 + $0x50] sm:$0xf]
        %v1062 = vld [vmem:[%s7 + $0x54] sm:$0xf]
        %v1063 = vld [vmem:[%s7 + $0x58] sm:$0xf]
        %v1064 = vld [vmem:[%s7 + $0x5c] sm:$0xf]
        %v1065 = vld [vmem:[%s7 + $0x60] sm:$0xf]
        %v1066 = vld [vmem:[%s7 + $0x64] sm:$0xf]
        %v1067 = vld [vmem:[%s7 + $0x68] sm:$0xf]
        %v1068 = vld [vmem:[%s7 + $0x6c] sm:$0xf]
        %v1069 = vld [vmem:[%s7 + $0x70] sm:$0xf]
        %v1070 = vld [vmem:[%s7 + $0x74] sm:$0xf]
        %v1071 = vld [vmem:[%s7 + $0x78] sm:$0xf]
        %v1072 = vld [vmem:[%s7 + $0x7c] sm:$0xf]
        %v1073 = vld [vmem:[%s8] sm:$0x1]
        %v1075 = vperm.slane %v1073, 0
        %v1109 = vunpack.c.l.b16 %v1041
        %v1110 = vunpack.c.l.b16 %v1042
        %v1111 = vunpack.c.l.b16 %v1043
        %v1112 = vunpack.c.l.b16 %v1044
        %v1113 = vunpack.c.l.b16 %v1045
        %v1114 = vunpack.c.l.b16 %v1046
        %v1115 = vunpack.c.l.b16 %v1047
        %v1116 = vunpack.c.l.b16 %v1048
        %v1117 = vunpack.c.l.b16 %v1049
        %v1118 = vunpack.c.l.b16 %v1050
        %v1119 = vunpack.c.l.b16 %v1051
        %v1120 = vunpack.c.l.b16 %v1052
        %v1121 = vunpack.c.l.b16 %v1053
        %v1122 = vunpack.c.l.b16 %v1054
        %v1123 = vunpack.c.l.b16 %v1055
        %v1124 = vunpack.c.l.b16 %v1056
        %v1125 = vunpack.c.l.b16 %v1057
        %v1126 = vunpack.c.l.b16 %v1058
        %v1127 = vunpack.c.l.b16 %v1059
        %v1128 = vunpack.c.l.b16 %v1060
        %v1129 = vunpack.c.l.b16 %v1061
        %v1130 = vunpack.c.l.b16 %v1062
        %v1131 = vunpack.c.l.b16 %v1063
        %v1132 = vunpack.c.l.b16 %v1064
        %v1133 = vunpack.c.l.b16 %v1065
        %v1134 = vunpack.c.l.b16 %v1066
        %v1135 = vunpack.c.l.b16 %v1067
        %v1136 = vunpack.c.l.b16 %v1068
        %v1137 = vunpack.c.l.b16 %v1069
        %v1138 = vunpack.c.l.b16 %v1070
        %v1139 = vunpack.c.l.b16 %v1071
        %v1140 = vunpack.c.l.b16 %v1072
        %v1141 = vpack.c.b16 %v1110, %v1109
        %v1142 = vpack.c.b16 %v1112, %v1111
        %v1143 = vpack.c.b16 %v1114, %v1113
        %v1144 = vpack.c.b16 %v1116, %v1115
        %v1145 = vpack.c.b16 %v1118, %v1117
        %v1146 = vpack.c.b16 %v1120, %v1119
        %v1147 = vpack.c.b16 %v1122, %v1121
        %v1148 = vpack.c.b16 %v1124, %v1123
        %v1149 = vpack.c.b16 %v1126, %v1125
        %v1150 = vpack.c.b16 %v1128, %v1127
        %v1151 = vpack.c.b16 %v1130, %v1129
        %v1152 = vpack.c.b16 %v1132, %v1131
        %v1153 = vpack.c.b16 %v1134, %v1133
        %v1154 = vpack.c.b16 %v1136, %v1135
        %v1155 = vpack.c.b16 %v1138, %v1137
        %v1156 = vpack.c.b16 %v1140, %v1139
        %1173 = vmatpush.bf16.msra.mxu0 %v1148
        %1174 = vmatpush.bf16.msra.mxu0 %v1147
        %1175 = vmatpush.bf16.msra.mxu0 %v1146
        %1176 = vmatpush.bf16.msra.mxu0 %v1145
        %1177 = vmatpush.bf16.msra.mxu0 %v1144
        %1178 = vmatpush.bf16.msra.mxu0 %v1143
        %1179 = vmatpush.bf16.msra.mxu0 %v1142
        %1180 = vmatpush.bf16.msra.mxu0 %v1141
        %1181 = vmatmul.bf16.gmra.mxu0 %v1039
        %v1182 = vpop.f32.mrf.mxu0
        %v1183 = vadd.f32 %v1075, %v1182
        %v1184 = vpop.f32.mrf.mxu0
        %v1185 = vadd.f32 %v1075, %v1184
        %1186 = vdwg.mxu0
        %1187 = vmatpush.bf16.msra.mxu0 %v1156
        %1188 = vmatpush.bf16.msra.mxu0 %v1155
        %1189 = vmatpush.bf16.msra.mxu0 %v1154
        %1190 = vmatpush.bf16.msra.mxu0 %v1153
        %1191 = vmatpush.bf16.msra.mxu0 %v1152
        %1192 = vmatpush.bf16.msra.mxu0 %v1151
        %1193 = vmatpush.bf16.msra.mxu0 %v1150
        %1194 = vmatpush.bf16.msra.mxu0 %v1149
        %1195 = vmatmul.bf16.gmra.mxu0 %v1040
        %v1196 = vpop.f32.mrf.mxu0
        %v1197 = vadd.f32 %v1183, %v1196
        %v1198 = vpop.f32.mrf.mxu0
        %v1199 = vadd.f32 %v1185, %v1198
        %1200 = vdwg.mxu0
        %v1201 = vtanh.pop %v1197
        %v1202 = vtanh.pop %v1199
        %v1203 = vsel %vm1037, %v1201, 0.0
        %v1204 = vsel %vm1038, %v1202, 0.0
        %v1205 = vpack.c.bf16 %v1203, %v1203
        %v1206 = vpack.c.bf16 %v1204, %v1204
        %1207 = vst [vmem:[%s517] sm:$0xf] %v1205
        %1208 = vst [vmem:[%s517 + $0x4] sm:$0xf] %v1206
        %s1209 = smul.u32 2, %s39
        %p1210 = scmp.lt.s32.totalorder %s38, 1
        %s1211 = scalar_select %p1210, %s38, 1
        %p1212 = scmp.lt.s32.totalorder %s1209, 1
        %s1213 = scalar_select %p1212, %s1209, 1
        %s1214 = smul.addr %s1211, 2
        %s1215 = sadd.s32 %s1213, %s1214
        %s1216 = smul.addr %s1215, 4
        %s1217 = scalar_lea.vmem %s9, %s1216
        %s1218 = smul.u32 2, %s39
        %p1219 = scmp.lt.s32.totalorder %s38, 1
        %s1220 = scalar_select %p1219, %s38, 1
        %p1221 = scmp.lt.s32.totalorder %s1218, 1
        %s1222 = scalar_select %p1221, %s1218, 1
        %s1223 = smul.addr %s1220, 2
        %s1224 = sadd.s32 %s1222, %s1223
        %s1225 = smul.addr %s1224, 4
        %s1226 = scalar_lea.vmem %s10, %s1225
        %s1227 = smul.u32 2, %s39
        %p1228 = scmp.lt.s32.totalorder %s38, 1
        %s1229 = scalar_select %p1228, %s38, 1
        %p1230 = scmp.lt.s32.totalorder %s1227, 1
        %s1231 = scalar_select %p1230, %s1227, 1
        %s1232 = smul.addr %s1229, 2
        %s1233 = sadd.s32 %s1231, %s1232
        %s1234 = smul.addr %s1233, 4
        %s1235 = scalar_lea.vmem %s11, %s1234
        %s1236 = smul.u32 2, %s39
        %p1237 = scmp.lt.s32.totalorder %s38, 1
        %s1238 = scalar_select %p1237, %s38, 1
        %p1239 = scmp.lt.s32.totalorder %s1236, 1
        %s1240 = scalar_select %p1239, %s1236, 1
        %s1241 = smul.addr %s1238, 2
        %s1242 = sadd.s32 %s1240, %s1241
        %s1243 = smul.addr %s1242, 4
        %s1244 = scalar_lea.vmem %s12, %s1243
        // Predicated region
        $region61: #{enhancement_pipeline.1} parent=51 // pred_check
          %p1245 = pneg %p241
        $region62: #{enhancement_pipeline.1} parent=51 // pred_check_branch
          %1247 = sbr.rel (%p1245) target = $region64
        $region63: #{enhancement_pipeline.1} parent=51 // pred_region
          %s1248 = smul.u32 2, %s39
        $region64: #{enhancement_pipeline.1} parent=51 // pred_fallthru
          _
        // Predicated region
        $region65: #{enhancement_pipeline.1} parent=51 // pred_check
          %p1249 = pneg %p269
        $region66: #{enhancement_pipeline.1} parent=51 // pred_check_branch
          %1251 = sbr.rel (%p1249) target = $region68
        $region67: #{enhancement_pipeline.1} parent=51 // pred_region
          %s1252 = smul.u32 2, %s39
        $region68: #{enhancement_pipeline.1} parent=51 // pred_fallthru
          _
        // Predicated region
        $region69: #{enhancement_pipeline.1} parent=51 // pred_check
          %p1253 = pneg %p297
        $region70: #{enhancement_pipeline.1} parent=51 // pred_check_branch
          %1255 = sbr.rel (%p1253) target = $region72
        $region71: #{enhancement_pipeline.1} parent=51 // pred_region
          %s1256 = smul.u32 2, %s39
        $region72: #{enhancement_pipeline.1} parent=51 // pred_fallthru
          _
        // Predicated region
        $region73: #{enhancement_pipeline.1} parent=51 // pred_check
          %p1257 = pneg %p325
        $region74: #{enhancement_pipeline.1} parent=51 // pred_check_branch
          %1259 = sbr.rel (%p1257) target = $region76
        $region75: #{enhancement_pipeline.1} parent=51 // pred_region
          %s1260 = smul.u32 2, %s39
        $region76: #{enhancement_pipeline.1} parent=51 // pred_fallthru
          _
      $region52: #{enhancement_pipeline.1} parent=5 // pred_fallthru
        _
      %p1261 = scmp.le.s32.totalorder 2, %s29
      // Predicated region
      $region77: #{enhancement_pipeline.1} parent=5 // pred_check
        %p1262 = pneg %p1261
      $region78: #{enhancement_pipeline.1} parent=5 // pred_check_branch
        %1264 = sbr.rel (%p1262) target = $region80
      $region79: #{enhancement_pipeline.1} parent=5 // pred_region
        %s1265 = ssub.s32 %s29, 2
        // Predicated region
        $region81: #{enhancement_pipeline.1} parent=79 // pred_check
          %p1266 = pneg %p247
        $region82: #{enhancement_pipeline.1} parent=79 // pred_check_branch
          %1268 = sbr.rel (%p1266) target = $region84
        $region83: #{enhancement_pipeline.1} parent=79 // pred_region
          %s1269 = smul.u32 2, %s41
          %p1270 = scmp.lt.s32.totalorder %s40, 1
          %s1271 = scalar_select %p1270, %s40, 1
          %p1272 = scmp.lt.s32.totalorder %s1269, 1
          %s1273 = scalar_select %p1272, %s1269, 1
          %s1274 = smul.addr %s1271, 2
          %s1275 = sadd.s32 %s1273, %s1274
          %s1276 = smul.addr %s1275, 4
          %s1277 = scalar_lea.vmem %s9, %s1276
        $region84: #{enhancement_pipeline.1} parent=79 // pred_fallthru
          _
        // Predicated region
        $region85: #{enhancement_pipeline.1} parent=79 // pred_check
          %p1278 = pneg %p275
        $region86: #{enhancement_pipeline.1} parent=79 // pred_check_branch
          %1280 = sbr.rel (%p1278) target = $region88
        $region87: #{enhancement_pipeline.1} parent=79 // pred_region
          %s1281 = smul.u32 2, %s41
          %p1282 = scmp.lt.s32.totalorder %s40, 1
          %s1283 = scalar_select %p1282, %s40, 1
          %p1284 = scmp.lt.s32.totalorder %s1281, 1
          %s1285 = scalar_select %p1284, %s1281, 1
          %s1286 = smul.addr %s1283, 2
          %s1287 = sadd.s32 %s1285, %s1286
          %s1288 = smul.addr %s1287, 4
          %s1289 = scalar_lea.vmem %s10, %s1288
        $region88: #{enhancement_pipeline.1} parent=79 // pred_fallthru
          _
        // Predicated region
        $region89: #{enhancement_pipeline.1} parent=79 // pred_check
          %p1290 = pneg %p303
        $region90: #{enhancement_pipeline.1} parent=79 // pred_check_branch
          %1292 = sbr.rel (%p1290) target = $region92
        $region91: #{enhancement_pipeline.1} parent=79 // pred_region
          %s1293 = smul.u32 2, %s41
          %p1294 = scmp.lt.s32.totalorder %s40, 1
          %s1295 = scalar_select %p1294, %s40, 1
          %p1296 = scmp.lt.s32.totalorder %s1293, 1
          %s1297 = scalar_select %p1296, %s1293, 1
          %s1298 = smul.addr %s1295, 2
          %s1299 = sadd.s32 %s1297, %s1298
          %s1300 = smul.addr %s1299, 4
          %s1301 = scalar_lea.vmem %s11, %s1300
        $region92: #{enhancement_pipeline.1} parent=79 // pred_fallthru
          _
        // Predicated region
        $region93: #{enhancement_pipeline.1} parent=79 // pred_check
          %p1302 = pneg %p331
        $region94: #{enhancement_pipeline.1} parent=79 // pred_check_branch
          %1304 = sbr.rel (%p1302) target = $region96
        $region95: #{enhancement_pipeline.1} parent=79 // pred_region
          %s1305 = smul.u32 2, %s41
          %p1306 = scmp.lt.s32.totalorder %s40, 1
          %s1307 = scalar_select %p1306, %s40, 1
          %p1308 = scmp.lt.s32.totalorder %s1305, 1
          %s1309 = scalar_select %p1308, %s1305, 1
          %s1310 = smul.addr %s1307, 2
          %s1311 = sadd.s32 %s1309, %s1310
          %s1312 = smul.addr %s1311, 4
          %s1313 = scalar_lea.vmem %s12, %s1312
        $region96: #{enhancement_pipeline.1} parent=79 // pred_fallthru
          _
      $region80: #{enhancement_pipeline.1} parent=5 // pred_fallthru
        _
    $region6: #{enhancement_pipeline.1} parent=1 // loop_footer
      %s33 = sadd.s32 1, %s29
    $region7: #{enhancement_pipeline.1} parent=1 // loop_footer_branch
      %28 = sbr.rel target = $region3
    $region8: #{enhancement_pipeline.1} parent=1 // loop_exit
      _
    %1314 = vsyncpa [#allocation5], 1
    %s1315 = scalar_lea.sflag [#allocation5], 1
    %1316 = vsyncpa %s1315, 1
    %1317 = vsyncpa [#allocation7], 1

</llo_original>
